<compile_context>
chip_gen: v7x
topology: tpu7x:2x2x1
jax: 0.10.0
libtpu: 0.0.40
codegen_flags: <defaults>
</compile_context>

<pallas_src>
import functools

import jax
import jax.numpy as jnp
from jax import lax
from jax.experimental import pallas as pl
from jax.experimental.pallas import tpu as pltpu


# ------------------------------ Pallas kernel -------------------------------

def _conv_block(rows_in, w_ref, scale_ref, shift_ref, mask_l, mask_r,
                compute_dtype):
    """One ConvCompressH block as a single im2col matmul.

    rows_in  : list of Hin arrays, each (Ci, Ncol) f32, Ncol = Nb*W (batch on lanes)
    w_ref    : (Co, 9*Ci) VMEM ref, columns ordered (kh, kw, ci)
    scale_ref, shift_ref : (Co, 1) VMEM refs (conv bias + eval BN folded)
    mask_l / mask_r : (1, Ncol) f32, zero at the left / right edge of every
                      per-batch W segment (zero padding of the kw taps)
    returns  : list of Ho arrays, each (Co, Ncol) f32, Ho = (Hin-1)//2 + 1
    """
    Hin = len(rows_in)
    Ci, Ncol = rows_in[0].shape
    Ho = (Hin - 1) // 2 + 1

    # Three kw taps per input row; boundary columns zeroed by the masks.
    tap_m1, tap_0, tap_p1 = [], rows_in, []
    for r in rows_in:
        tap_m1.append(mask_l * jnp.concatenate([r[:, :1], r[:, :-1]], axis=1))
        tap_p1.append(mask_r * jnp.concatenate([r[:, 1:], r[:, -1:]], axis=1))
    taps = (tap_m1, tap_0, tap_p1)          # taps[kw][h] == in[:, c + kw - 1]

    # im2col: B[(kh*3+kw)*Ci + ci, ho*Ncol + c] = x[ci, 2*ho-1+kh, c+kw-1]
    zero_row = jnp.zeros((Ci, Ncol), jnp.float32)
    cols = []
    for ho in range(Ho):
        pieces = []
        for kh in range(3):
            h_in = 2 * ho - 1 + kh          # stride 2, pad 1 in H
            for kw in range(3):
                pieces.append(taps[kw][h_in] if 0 <= h_in < Hin else zero_row)
        cols.append(jnp.concatenate(pieces, axis=0))            # (9*Ci, Ncol)
    B = cols[0] if Ho == 1 else jnp.concatenate(cols, axis=1)   # (9*Ci, Ho*Ncol)

    w2 = w_ref[...]                                             # (Co, 9*Ci)
    acc = jnp.dot(w2.astype(compute_dtype), B.astype(compute_dtype),
                  preferred_element_type=jnp.float32)           # (Co, Ho*Ncol)
    # Folded BN + bias + ReLU epilogue; one broadcast per block.
    act = jnp.maximum(acc * scale_ref[...] + shift_ref[...], 0.0)
    return [act[:, ho * Ncol:(ho + 1) * Ncol] for ho in range(Ho)]


def _ghc_fused_kernel(x_ref,
                      w1_ref, s1_ref, b1_ref,
                      w2_ref, s2_ref, b2_ref,
                      w3_ref, s3_ref, b3_ref,
                      w4_ref, s4_ref, b4_ref,
                      t_ref, o_ref, *, W, compute_dtype):
    # x_ref: (C, H, Nb*W) block (batch folded into lanes)
    # o_ref: (Hf*out_c, Nb*out_w) block (single lane-dense store)
    C, H, Ncol = x_ref.shape
    Nb = Ncol // W

    # Per-batch-segment boundary masks for the kw = 0 / 2 taps.
    col = lax.broadcasted_iota(jnp.int32, (1, Ncol), 1)
    left_edge = col == 0
    right_edge = col == (W - 1)
    for b in range(1, Nb):
        left_edge = jnp.logical_or(left_edge, col == b * W)
        right_edge = jnp.logical_or(right_edge, col == b * W + W - 1)
    mask_l = jnp.where(left_edge, 0.0, 1.0).astype(jnp.float32)
    mask_r = jnp.where(right_edge, 0.0, 1.0).astype(jnp.float32)

    rows = [x_ref[:, h, :] for h in range(H)]
    for (w_ref, s_ref, b_ref) in ((w1_ref, s1_ref, b1_ref),
                                  (w2_ref, s2_ref, b2_ref),
                                  (w3_ref, s3_ref, b3_ref),
                                  (w4_ref, s4_ref, b4_ref)):
        rows = _conv_block(rows, w_ref, s_ref, b_ref, mask_l, mask_r,
                           compute_dtype)

    # pano_upsample_w: circular wrap already baked into t_ref (block-diagonal
    # over the folded batch).  One dot, one full-block store.
    X = rows[0] if len(rows) == 1 else jnp.concatenate(rows, axis=0)  # (Hf*Cf, Ncol)
    T = t_ref[...]                                                    # (Ncol, Nb*out_w)
    Y = jnp.dot(X.astype(compute_dtype), T.astype(compute_dtype),
                preferred_element_type=jnp.float32)
    o_ref[...] = Y.astype(o_ref.dtype)


# ------------------------------- wrapper (JAX) ------------------------------

def pano_upsample_w_matrix(Wd, s):
    """(Wd, Wd*s) matrix reproducing: circular pad 1 col each side,
    F.interpolate(scale_factor=(1, s), bilinear, align_corners=False), crop
    [..., s:-s].  The circular wrap is folded into rows 0 and Wd-1."""
    Wp = Wd + 2
    Wout = Wd * s
    j = jnp.arange(Wout, dtype=jnp.float32)
    src = (j + s + 0.5) / s - 0.5            # source coord in the padded row
    src = jnp.maximum(src, 0.0)
    i0 = jnp.clip(jnp.floor(src).astype(jnp.int32), 0, Wp - 1)
    i1 = jnp.minimum(i0 + 1, Wp - 1)
    frac = src - i0.astype(jnp.float32)
    cols = jnp.arange(Wout)
    Tpad = jnp.zeros((Wp, Wout), jnp.float32)
    Tpad = Tpad.at[i0, cols].add(1.0 - frac)
    Tpad = Tpad.at[i1, cols].add(frac)
    # Fold circular pad: padded row 0 <- column Wd-1, padded row Wp-1 <- column 0.
    T = Tpad[1:Wd + 1]
    T = T.at[Wd - 1].add(Tpad[0])
    T = T.at[0].add(Tpad[Wp - 1])
    return T


def _pinned_spec(shape):
    # Whole-array block, same block every grid step (weights / tables).
    zeros = (0,) * len(shape)
    return pl.BlockSpec(shape, lambda n, _z=zeros: _z)


def _pick_batch_block(N, W):
    """Largest batch fold with Nb*W <= 512, stopping once lanes are dense."""
    best = 1
    for d in range(1, N + 1):
        if N % d != 0:
            continue
        if d * W > 512:
            break
        best = d
        if best * W >= 128:
            break
    return best


def global_height_conv_forward(x_nchw, kparams, out_w, *,
                               compute_dtype=jnp.float32, batch_block=None):
    """x_nchw: (N, C, H, W).  kparams: 4 tuples (w2 (Co, 9*Ci), scale (Co,1),
    shift (Co,1)).  Returns (N, out_c, H_final, out_w) float32."""
    x = x_nchw.astype(jnp.float32)
    N, C, H, W = x.shape
    assert out_w % W == 0, (out_w, W)        # width preserved by the convs
    s = out_w // W
    Hf = H
    for _ in range(len(kparams)):
        Hf = (Hf - 1) // 2 + 1
    out_c = kparams[-1][0].shape[0]

    Nb = _pick_batch_block(N, W) if batch_block is None else batch_block
    assert N % Nb == 0, (N, Nb)
    G = N // Nb
    Ncol = Nb * W

    # Layout plumbing: fold Nb batch elements into the lane axis (b outer, w inner).
    x5 = (x.reshape(G, Nb, C, H, W)
           .transpose(0, 2, 3, 1, 4)
           .reshape(G, C, H, Ncol))

    T = pano_upsample_w_matrix(W, s)                           # (W, out_w)
    T_nb = jnp.kron(jnp.eye(Nb, dtype=jnp.float32), T)        # block-diag, per-element wrap

    flat = []
    for (w2, scale, shift) in kparams:
        flat += [w2, scale, shift]
    flat.append(T_nb)

    in_specs = [pl.BlockSpec((None, C, H, Ncol), lambda n: (n, 0, 0, 0))]
    in_specs += [_pinned_spec(a.shape) for a in flat]

    kernel = functools.partial(_ghc_fused_kernel, W=W, compute_dtype=compute_dtype)

    out3 = pl.pallas_call(
        kernel,
        out_shape=jax.ShapeDtypeStruct((G, Hf * out_c, Nb * out_w), jnp.float32),
        grid=(G,),
        in_specs=in_specs,
        out_specs=pl.BlockSpec((None, Hf * out_c, Nb * out_w), lambda n: (n, 0, 0)),
        compiler_params=pltpu.CompilerParams(
            dimension_semantics=("parallel",),     # v7x: 2 TCs split the batch grid
            vmem_limit_bytes=48 * 1024 * 1024),    # fits v7x's 64 MiB/TC; fine on v5e/v6e
    )(x5, *flat)

    # Unfold (G, Hf*Cf, Nb*out_w) -> (N, out_c, Hf, out_w).  Layout plumbing only.
    y = (out3.reshape(G, Hf, out_c, Nb, out_w)
              .transpose(0, 3, 2, 1, 4)
              .reshape(N, out_c, Hf, out_w))
    return y


# ------------------------- synthetic params & reference ---------------------

def make_raw_params(key, in_c, out_c):
    """Deterministic synthetic Conv+BN(eval) params; BN and conv bias folded
    into per-channel scale/shift.  Returns [(w (3,3,Ci,Co), scale, shift)]."""
    chans = [in_c, in_c // 2, in_c // 2, in_c // 4, out_c]
    eps = 1e-5
    params = []
    for i in range(4):
        ci, co = chans[i], chans[i + 1]
        key, k1, k2, k3, k4, k5, k6 = jax.random.split(key, 7)
        w = 0.1 * jax.random.normal(k1, (3, 3, ci, co), jnp.float32)
        b = 0.1 * jax.random.normal(k2, (co,), jnp.float32)
        gamma = 1.0 + 0.1 * jax.random.normal(k3, (co,), jnp.float32)
        beta = 0.1 * jax.random.normal(k4, (co,), jnp.float32)
        mean = 0.1 * jax.random.normal(k5, (co,), jnp.float32)
        var = 1.0 + 0.1 * jnp.abs(jax.random.normal(k6, (co,), jnp.float32))
        s_bn = gamma / jnp.sqrt(var + eps)
        params.append((w, s_bn, (b - mean) * s_bn + beta))
    return params


def to_kernel_params(raw_params):
    """(3,3,Ci,Co) weights -> im2col weights (Co, 9*Ci), columns (kh, kw, ci)."""
    out = []
    for (w, scale, shift) in raw_params:
        ci, co = w.shape[2], w.shape[3]
        w2 = jnp.transpose(w, (3, 0, 1, 2)).reshape(co, 9 * ci)
        out.append((w2, scale.reshape(co, 1), shift.reshape(co, 1)))
    return out


def ref_forward(x, raw_params, out_w):
    """Pure-JAX reference: lax.conv + folded BN + ReLU, then pano_upsample_w."""
    y = x.astype(jnp.float32)
    for (w, scale, shift) in raw_params:
        w_oihw = jnp.transpose(w, (3, 2, 0, 1))
        y = lax.conv_general_dilated(
            y, w_oihw, window_strides=(2, 1), padding=((1, 1), (1, 1)),
            dimension_numbers=('NCHW', 'OIHW', 'NCHW'),
            precision=lax.Precision.HIGHEST)
        y = jnp.maximum(y * scale[None, :, None, None]
                        + shift[None, :, None, None], 0.0)
    s = out_w // y.shape[-1]
    xp = jnp.concatenate([y[..., -1:], y, y[..., :1]], axis=-1)
    Wp = xp.shape[-1]
    j = jnp.arange(Wp * s, dtype=jnp.float32)
    src = jnp.maximum((j + 0.5) / s - 0.5, 0.0)
    i0 = jnp.clip(jnp.floor(src).astype(jnp.int32), 0, Wp - 1)
    i1 = jnp.minimum(i0 + 1, Wp - 1)
    frac = src - i0.astype(jnp.float32)
    up = jnp.take(xp, i0, axis=-1) * (1.0 - frac) + jnp.take(xp, i1, axis=-1) * frac
    return up[..., s:-s]


if __name__ == "__main__":
    key = jax.random.PRNGKey(0)
    kx, kp = jax.random.split(key)
    in_c, out_c = 8, 8
    N, H, W = 2, 16, 16
    out_w = 64   # must be a multiple of W

    x = jax.random.normal(kx, (N, in_c, H, W), jnp.float32)
    raw_params = make_raw_params(kp, in_c, out_c)
    kparams = to_kernel_params(raw_params)

    y = global_height_conv_forward(x, kparams, out_w)
    y = jax.block_until_ready(y)

    # H halves 4 times: 16 -> 8 -> 4 -> 2 -> 1
    assert y.shape == (N, out_c, 1, out_w), y.shape
    assert bool(jnp.all(jnp.isfinite(y)))

    y_ref = ref_forward(x, raw_params, out_w)
    err = float(jnp.max(jnp.abs(y - y_ref)))
    assert err < 3e-2, err   # f32 MXU path vs HIGHEST-precision reference

    # bf16 MXU path (v6e/v7x): dot operands bf16, f32 accumulation/epilogue.
    # Tolerance re-derived: 2^-9 relative rounding on both operands, K<=72,
    # |w|~0.1, |act|~O(1) => ~3e-3 abs error/block, compounding ~linearly over
    # 4 blocks + upsample => expected <~2e-2; assert with ~5x margin.
    y_bf16 = global_height_conv_forward(x, kparams, out_w,
                                        compute_dtype=jnp.bfloat16)
    y_bf16 = jax.block_until_ready(y_bf16)
    err_bf16 = float(jnp.max(jnp.abs(y_bf16 - y_ref)))
    assert err_bf16 < 1e-1, err_bf16

    print("KERNEL_OK")
</pallas_src>

<mosaic_0001>
module attributes {stable_mosaic.version = 11 : i64} {
  func.func @_ghc_fused_kernel(%arg0: i32, %arg1: memref<1x8x16x32xf32, #tpu.memory_space<vmem>>, %arg2: memref<4x72xf32, #tpu.memory_space<vmem>>, %arg3: memref<4x1xf32, #tpu.memory_space<vmem>>, %arg4: memref<4x1xf32, #tpu.memory_space<vmem>>, %arg5: memref<4x36xf32, #tpu.memory_space<vmem>>, %arg6: memref<4x1xf32, #tpu.memory_space<vmem>>, %arg7: memref<4x1xf32, #tpu.memory_space<vmem>>, %arg8: memref<2x36xf32, #tpu.memory_space<vmem>>, %arg9: memref<2x1xf32, #tpu.memory_space<vmem>>, %arg10: memref<2x1xf32, #tpu.memory_space<vmem>>, %arg11: memref<8x18xf32, #tpu.memory_space<vmem>>, %arg12: memref<8x1xf32, #tpu.memory_space<vmem>>, %arg13: memref<8x1xf32, #tpu.memory_space<vmem>>, %arg14: memref<32x128xf32, #tpu.memory_space<vmem>>, %arg15: memref<1x8x128xf32, #tpu.memory_space<vmem>>) attributes {dimension_semantics = [#tpu.dimension_semantics<parallel>], iteration_bounds = array<i64: 1>, scalar_prefetch = 0 : i64, scratch_operands = 0 : i64, tpu.core_type = #tpu.core_type<tc>, window_params = [{transform_indices = @transform_0, window_bounds = array<i64: 1, 8, 16, 32>}, {pipeline_mode = #tpu.pipeline_mode<synchronous>, transform_indices = @transform_1, window_bounds = array<i64: 4, 72>}, {pipeline_mode = #tpu.pipeline_mode<synchronous>, transform_indices = @transform_2, window_bounds = array<i64: 4, 1>}, {pipeline_mode = #tpu.pipeline_mode<synchronous>, transform_indices = @transform_3, window_bounds = array<i64: 4, 1>}, {pipeline_mode = #tpu.pipeline_mode<synchronous>, transform_indices = @transform_4, window_bounds = array<i64: 4, 36>}, {pipeline_mode = #tpu.pipeline_mode<synchronous>, transform_indices = @transform_5, window_bounds = array<i64: 4, 1>}, {pipeline_mode = #tpu.pipeline_mode<synchronous>, transform_indices = @transform_6, window_bounds = array<i64: 4, 1>}, {pipeline_mode = #tpu.pipeline_mode<synchronous>, transform_indices = @transform_7, window_bounds = array<i64: 2, 36>}, {pipeline_mode = #tpu.pipeline_mode<synchronous>, transform_indices = @transform_8, window_bounds = array<i64: 2, 1>}, {pipeline_mode = #tpu.pipeline_mode<synchronous>, transform_indices = @transform_9, window_bounds = array<i64: 2, 1>}, {pipeline_mode = #tpu.pipeline_mode<synchronous>, transform_indices = @transform_10, window_bounds = array<i64: 8, 18>}, {pipeline_mode = #tpu.pipeline_mode<synchronous>, transform_indices = @transform_11, window_bounds = array<i64: 8, 1>}, {pipeline_mode = #tpu.pipeline_mode<synchronous>, transform_indices = @transform_12, window_bounds = array<i64: 8, 1>}, {pipeline_mode = #tpu.pipeline_mode<synchronous>, transform_indices = @transform_13, window_bounds = array<i64: 32, 128>}, {transform_indices = @transform_14, window_bounds = array<i64: 1, 8, 128>}]} {
    %0 = tpu.iota {dimensions = array<i32: 1>} : vector<1x32xi32>
    %c0_i32 = arith.constant 0 : i32
    %1 = vector.broadcast %c0_i32 : i32 to vector<1x32xi32>
    %2 = arith.cmpi eq, %0, %1 : vector<1x32xi32>
    %c15_i32 = arith.constant 15 : i32
    %3 = vector.broadcast %c15_i32 : i32 to vector<1x32xi32>
    %4 = arith.cmpi eq, %0, %3 : vector<1x32xi32>
    %c16_i32 = arith.constant 16 : i32
    %5 = vector.broadcast %c16_i32 : i32 to vector<1x32xi32>
    %6 = arith.cmpi eq, %0, %5 : vector<1x32xi32>
    %7 = arith.ori %2, %6 : vector<1x32xi1>
    %c31_i32 = arith.constant 31 : i32
    %8 = vector.broadcast %c31_i32 : i32 to vector<1x32xi32>
    %9 = arith.cmpi eq, %0, %8 : vector<1x32xi32>
    %10 = arith.ori %4, %9 : vector<1x32xi1>
    %cst = arith.constant 0.000000e+00 : f32
    %cst_0 = arith.constant 1.000000e+00 : f32
    %11 = vector.broadcast %cst : f32 to vector<1x32xf32>
    %12 = vector.broadcast %cst_0 : f32 to vector<1x32xf32>
    %13 = arith.select %7, %11, %12 : vector<1x32xi1>, vector<1x32xf32>
    %cst_1 = arith.constant 0.000000e+00 : f32
    %cst_2 = arith.constant 1.000000e+00 : f32
    %14 = vector.broadcast %cst_1 : f32 to vector<1x32xf32>
    %15 = vector.broadcast %cst_2 : f32 to vector<1x32xf32>
    %16 = arith.select %10, %14, %15 : vector<1x32xi1>, vector<1x32xf32>
    %c0 = arith.constant 0 : index
    %c0_3 = arith.constant 0 : index
    %c0_4 = arith.constant 0 : index
    %c0_5 = arith.constant 0 : index
    %17 = vector.load %arg1[%c0, %c0_3, %c0_4, %c0_5] : memref<1x8x16x32xf32, #tpu.memory_space<vmem>>, vector<1x8x1x32xf32>
    %18 = vector.shape_cast %17 : vector<1x8x1x32xf32> to vector<8x32xf32>
    %c0_6 = arith.constant 0 : index
    %c0_7 = arith.constant 0 : index
    %c1 = arith.constant 1 : index
    %c0_8 = arith.constant 0 : index
    %19 = vector.load %arg1[%c0_6, %c0_7, %c1, %c0_8] : memref<1x8x16x32xf32, #tpu.memory_space<vmem>>, vector<1x8x1x32xf32>
    %20 = vector.shape_cast %19 : vector<1x8x1x32xf32> to vector<8x32xf32>
    %c0_9 = arith.constant 0 : index
    %c0_10 = arith.constant 0 : index
    %c2 = arith.constant 2 : index
    %c0_11 = arith.constant 0 : index
    %21 = vector.load %arg1[%c0_9, %c0_10, %c2, %c0_11] : memref<1x8x16x32xf32, #tpu.memory_space<vmem>>, vector<1x8x1x32xf32>
    %22 = vector.shape_cast %21 : vector<1x8x1x32xf32> to vector<8x32xf32>
    %c0_12 = arith.constant 0 : index
    %c0_13 = arith.constant 0 : index
    %c3 = arith.constant 3 : index
    %c0_14 = arith.constant 0 : index
    %23 = vector.load %arg1[%c0_12, %c0_13, %c3, %c0_14] : memref<1x8x16x32xf32, #tpu.memory_space<vmem>>, vector<1x8x1x32xf32>
    %24 = vector.shape_cast %23 : vector<1x8x1x32xf32> to vector<8x32xf32>
    %c0_15 = arith.constant 0 : index
    %c0_16 = arith.constant 0 : index
    %c4 = arith.constant 4 : index
    %c0_17 = arith.constant 0 : index
    %25 = vector.load %arg1[%c0_15, %c0_16, %c4, %c0_17] : memref<1x8x16x32xf32, #tpu.memory_space<vmem>>, vector<1x8x1x32xf32>
    %26 = vector.shape_cast %25 : vector<1x8x1x32xf32> to vector<8x32xf32>
    %c0_18 = arith.constant 0 : index
    %c0_19 = arith.constant 0 : index
    %c5 = arith.constant 5 : index
    %c0_20 = arith.constant 0 : index
    %27 = vector.load %arg1[%c0_18, %c0_19, %c5, %c0_20] : memref<1x8x16x32xf32, #tpu.memory_space<vmem>>, vector<1x8x1x32xf32>
    %28 = vector.shape_cast %27 : vector<1x8x1x32xf32> to vector<8x32xf32>
    %c0_21 = arith.constant 0 : index
    %c0_22 = arith.constant 0 : index
    %c6 = arith.constant 6 : index
    %c0_23 = arith.constant 0 : index
    %29 = vector.load %arg1[%c0_21, %c0_22, %c6, %c0_23] : memref<1x8x16x32xf32, #tpu.memory_space<vmem>>, vector<1x8x1x32xf32>
    %30 = vector.shape_cast %29 : vector<1x8x1x32xf32> to vector<8x32xf32>
    %c0_24 = arith.constant 0 : index
    %c0_25 = arith.constant 0 : index
    %c7 = arith.constant 7 : index
    %c0_26 = arith.constant 0 : index
    %31 = vector.load %arg1[%c0_24, %c0_25, %c7, %c0_26] : memref<1x8x16x32xf32, #tpu.memory_space<vmem>>, vector<1x8x1x32xf32>
    %32 = vector.shape_cast %31 : vector<1x8x1x32xf32> to vector<8x32xf32>
    %c0_27 = arith.constant 0 : index
    %c0_28 = arith.constant 0 : index
    %c8 = arith.constant 8 : index
    %c0_29 = arith.constant 0 : index
    %33 = vector.load %arg1[%c0_27, %c0_28, %c8, %c0_29] : memref<1x8x16x32xf32, #tpu.memory_space<vmem>>, vector<1x8x1x32xf32>
    %34 = vector.shape_cast %33 : vector<1x8x1x32xf32> to vector<8x32xf32>
    %c0_30 = arith.constant 0 : index
    %c0_31 = arith.constant 0 : index
    %c9 = arith.constant 9 : index
    %c0_32 = arith.constant 0 : index
    %35 = vector.load %arg1[%c0_30, %c0_31, %c9, %c0_32] : memref<1x8x16x32xf32, #tpu.memory_space<vmem>>, vector<1x8x1x32xf32>
    %36 = vector.shape_cast %35 : vector<1x8x1x32xf32> to vector<8x32xf32>
    %c0_33 = arith.constant 0 : index
    %c0_34 = arith.constant 0 : index
    %c10 = arith.constant 10 : index
    %c0_35 = arith.constant 0 : index
    %37 = vector.load %arg1[%c0_33, %c0_34, %c10, %c0_35] : memref<1x8x16x32xf32, #tpu.memory_space<vmem>>, vector<1x8x1x32xf32>
    %38 = vector.shape_cast %37 : vector<1x8x1x32xf32> to vector<8x32xf32>
    %c0_36 = arith.constant 0 : index
    %c0_37 = arith.constant 0 : index
    %c11 = arith.constant 11 : index
    %c0_38 = arith.constant 0 : index
    %39 = vector.load %arg1[%c0_36, %c0_37, %c11, %c0_38] : memref<1x8x16x32xf32, #tpu.memory_space<vmem>>, vector<1x8x1x32xf32>
    %40 = vector.shape_cast %39 : vector<1x8x1x32xf32> to vector<8x32xf32>
    %c0_39 = arith.constant 0 : index
    %c0_40 = arith.constant 0 : index
    %c12 = arith.constant 12 : index
    %c0_41 = arith.constant 0 : index
    %41 = vector.load %arg1[%c0_39, %c0_40, %c12, %c0_41] : memref<1x8x16x32xf32, #tpu.memory_space<vmem>>, vector<1x8x1x32xf32>
    %42 = vector.shape_cast %41 : vector<1x8x1x32xf32> to vector<8x32xf32>
    %c0_42 = arith.constant 0 : index
    %c0_43 = arith.constant 0 : index
    %c13 = arith.constant 13 : index
    %c0_44 = arith.constant 0 : index
    %43 = vector.load %arg1[%c0_42, %c0_43, %c13, %c0_44] : memref<1x8x16x32xf32, #tpu.memory_space<vmem>>, vector<1x8x1x32xf32>
    %44 = vector.shape_cast %43 : vector<1x8x1x32xf32> to vector<8x32xf32>
    %c0_45 = arith.constant 0 : index
    %c0_46 = arith.constant 0 : index
    %c14 = arith.constant 14 : index
    %c0_47 = arith.constant 0 : index
    %45 = vector.load %arg1[%c0_45, %c0_46, %c14, %c0_47] : memref<1x8x16x32xf32, #tpu.memory_space<vmem>>, vector<1x8x1x32xf32>
    %46 = vector.shape_cast %45 : vector<1x8x1x32xf32> to vector<8x32xf32>
    %c0_48 = arith.constant 0 : index
    %c0_49 = arith.constant 0 : index
    %c15 = arith.constant 15 : index
    %c0_50 = arith.constant 0 : index
    %47 = vector.load %arg1[%c0_48, %c0_49, %c15, %c0_50] : memref<1x8x16x32xf32, #tpu.memory_space<vmem>>, vector<1x8x1x32xf32>
    %48 = vector.shape_cast %47 : vector<1x8x1x32xf32> to vector<8x32xf32>
    %49 = vector.extract_strided_slice %18 {offsets = [0, 0], sizes = [8, 1], strides = [1, 1]} : vector<8x32xf32> to vector<8x1xf32>
    %50 = vector.extract_strided_slice %18 {offsets = [0, 0], sizes = [8, 31], strides = [1, 1]} : vector<8x32xf32> to vector<8x31xf32>
    %51 = tpu.concatenate %49, %50 in 1 : vector<8x1xf32>, vector<8x31xf32> -> vector<8x32xf32>
    %52 = vector.broadcast %13 : vector<1x32xf32> to vector<8x32xf32>
    %53 = arith.mulf %52, %51 : vector<8x32xf32>
    %54 = vector.extract_strided_slice %18 {offsets = [0, 1], sizes = [8, 31], strides = [1, 1]} : vector<8x32xf32> to vector<8x31xf32>
    %55 = vector.extract_strided_slice %18 {offsets = [0, 31], sizes = [8, 1], strides = [1, 1]} : vector<8x32xf32> to vector<8x1xf32>
    %56 = tpu.concatenate %54, %55 in 1 : vector<8x31xf32>, vector<8x1xf32> -> vector<8x32xf32>
    %57 = vector.broadcast %16 : vector<1x32xf32> to vector<8x32xf32>
    %58 = arith.mulf %57, %56 : vector<8x32xf32>
    %59 = vector.extract_strided_slice %20 {offsets = [0, 0], sizes = [8, 1], strides = [1, 1]} : vector<8x32xf32> to vector<8x1xf32>
    %60 = vector.extract_strided_slice %20 {offsets = [0, 0], sizes = [8, 31], strides = [1, 1]} : vector<8x32xf32> to vector<8x31xf32>
    %61 = tpu.concatenate %59, %60 in 1 : vector<8x1xf32>, vector<8x31xf32> -> vector<8x32xf32>
    %62 = vector.broadcast %13 : vector<1x32xf32> to vector<8x32xf32>
    %63 = arith.mulf %62, %61 : vector<8x32xf32>
    %64 = vector.extract_strided_slice %20 {offsets = [0, 1], sizes = [8, 31], strides = [1, 1]} : vector<8x32xf32> to vector<8x31xf32>
    %65 = vector.extract_strided_slice %20 {offsets = [0, 31], sizes = [8, 1], strides = [1, 1]} : vector<8x32xf32> to vector<8x1xf32>
    %66 = tpu.concatenate %64, %65 in 1 : vector<8x31xf32>, vector<8x1xf32> -> vector<8x32xf32>
    %67 = vector.broadcast %16 : vector<1x32xf32> to vector<8x32xf32>
    %68 = arith.mulf %67, %66 : vector<8x32xf32>
    %69 = vector.extract_strided_slice %22 {offsets = [0, 0], sizes = [8, 1], strides = [1, 1]} : vector<8x32xf32> to vector<8x1xf32>
    %70 = vector.extract_strided_slice %22 {offsets = [0, 0], sizes = [8, 31], strides = [1, 1]} : vector<8x32xf32> to vector<8x31xf32>
    %71 = tpu.concatenate %69, %70 in 1 : vector<8x1xf32>, vector<8x31xf32> -> vector<8x32xf32>
    %72 = vector.broadcast %13 : vector<1x32xf32> to vector<8x32xf32>
    %73 = arith.mulf %72, %71 : vector<8x32xf32>
    %74 = vector.extract_strided_slice %22 {offsets = [0, 1], sizes = [8, 31], strides = [1, 1]} : vector<8x32xf32> to vector<8x31xf32>
    %75 = vector.extract_strided_slice %22 {offsets = [0, 31], sizes = [8, 1], strides = [1, 1]} : vector<8x32xf32> to vector<8x1xf32>
    %76 = tpu.concatenate %74, %75 in 1 : vector<8x31xf32>, vector<8x1xf32> -> vector<8x32xf32>
    %77 = vector.broadcast %16 : vector<1x32xf32> to vector<8x32xf32>
    %78 = arith.mulf %77, %76 : vector<8x32xf32>
    %79 = vector.extract_strided_slice %24 {offsets = [0, 0], sizes = [8, 1], strides = [1, 1]} : vector<8x32xf32> to vector<8x1xf32>
    %80 = vector.extract_strided_slice %24 {offsets = [0, 0], sizes = [8, 31], strides = [1, 1]} : vector<8x32xf32> to vector<8x31xf32>
    %81 = tpu.concatenate %79, %80 in 1 : vector<8x1xf32>, vector<8x31xf32> -> vector<8x32xf32>
    %82 = vector.broadcast %13 : vector<1x32xf32> to vector<8x32xf32>
    %83 = arith.mulf %82, %81 : vector<8x32xf32>
    %84 = vector.extract_strided_slice %24 {offsets = [0, 1], sizes = [8, 31], strides = [1, 1]} : vector<8x32xf32> to vector<8x31xf32>
    %85 = vector.extract_strided_slice %24 {offsets = [0, 31], sizes = [8, 1], strides = [1, 1]} : vector<8x32xf32> to vector<8x1xf32>
    %86 = tpu.concatenate %84, %85 in 1 : vector<8x31xf32>, vector<8x1xf32> -> vector<8x32xf32>
    %87 = vector.broadcast %16 : vector<1x32xf32> to vector<8x32xf32>
    %88 = arith.mulf %87, %86 : vector<8x32xf32>
    %89 = vector.extract_strided_slice %26 {offsets = [0, 0], sizes = [8, 1], strides = [1, 1]} : vector<8x32xf32> to vector<8x1xf32>
    %90 = vector.extract_strided_slice %26 {offsets = [0, 0], sizes = [8, 31], strides = [1, 1]} : vector<8x32xf32> to vector<8x31xf32>
    %91 = tpu.concatenate %89, %90 in 1 : vector<8x1xf32>, vector<8x31xf32> -> vector<8x32xf32>
    %92 = vector.broadcast %13 : vector<1x32xf32> to vector<8x32xf32>
    %93 = arith.mulf %92, %91 : vector<8x32xf32>
    %94 = vector.extract_strided_slice %26 {offsets = [0, 1], sizes = [8, 31], strides = [1, 1]} : vector<8x32xf32> to vector<8x31xf32>
    %95 = vector.extract_strided_slice %26 {offsets = [0, 31], sizes = [8, 1], strides = [1, 1]} : vector<8x32xf32> to vector<8x1xf32>
    %96 = tpu.concatenate %94, %95 in 1 : vector<8x31xf32>, vector<8x1xf32> -> vector<8x32xf32>
    %97 = vector.broadcast %16 : vector<1x32xf32> to vector<8x32xf32>
    %98 = arith.mulf %97, %96 : vector<8x32xf32>
    %99 = vector.extract_strided_slice %28 {offsets = [0, 0], sizes = [8, 1], strides = [1, 1]} : vector<8x32xf32> to vector<8x1xf32>
    %100 = vector.extract_strided_slice %28 {offsets = [0, 0], sizes = [8, 31], strides = [1, 1]} : vector<8x32xf32> to vector<8x31xf32>
    %101 = tpu.concatenate %99, %100 in 1 : vector<8x1xf32>, vector<8x31xf32> -> vector<8x32xf32>
    %102 = vector.broadcast %13 : vector<1x32xf32> to vector<8x32xf32>
    %103 = arith.mulf %102, %101 : vector<8x32xf32>
    %104 = vector.extract_strided_slice %28 {offsets = [0, 1], sizes = [8, 31], strides = [1, 1]} : vector<8x32xf32> to vector<8x31xf32>
    %105 = vector.extract_strided_slice %28 {offsets = [0, 31], sizes = [8, 1], strides = [1, 1]} : vector<8x32xf32> to vector<8x1xf32>
    %106 = tpu.concatenate %104, %105 in 1 : vector<8x31xf32>, vector<8x1xf32> -> vector<8x32xf32>
    %107 = vector.broadcast %16 : vector<1x32xf32> to vector<8x32xf32>
    %108 = arith.mulf %107, %106 : vector<8x32xf32>
    %109 = vector.extract_strided_slice %30 {offsets = [0, 0], sizes = [8, 1], strides = [1, 1]} : vector<8x32xf32> to vector<8x1xf32>
    %110 = vector.extract_strided_slice %30 {offsets = [0, 0], sizes = [8, 31], strides = [1, 1]} : vector<8x32xf32> to vector<8x31xf32>
    %111 = tpu.concatenate %109, %110 in 1 : vector<8x1xf32>, vector<8x31xf32> -> vector<8x32xf32>
    %112 = vector.broadcast %13 : vector<1x32xf32> to vector<8x32xf32>
    %113 = arith.mulf %112, %111 : vector<8x32xf32>
    %114 = vector.extract_strided_slice %30 {offsets = [0, 1], sizes = [8, 31], strides = [1, 1]} : vector<8x32xf32> to vector<8x31xf32>
    %115 = vector.extract_strided_slice %30 {offsets = [0, 31], sizes = [8, 1], strides = [1, 1]} : vector<8x32xf32> to vector<8x1xf32>
    %116 = tpu.concatenate %114, %115 in 1 : vector<8x31xf32>, vector<8x1xf32> -> vector<8x32xf32>
    %117 = vector.broadcast %16 : vector<1x32xf32> to vector<8x32xf32>
    %118 = arith.mulf %117, %116 : vector<8x32xf32>
    %119 = vector.extract_strided_slice %32 {offsets = [0, 0], sizes = [8, 1], strides = [1, 1]} : vector<8x32xf32> to vector<8x1xf32>
    %120 = vector.extract_strided_slice %32 {offsets = [0, 0], sizes = [8, 31], strides = [1, 1]} : vector<8x32xf32> to vector<8x31xf32>
    %121 = tpu.concatenate %119, %120 in 1 : vector<8x1xf32>, vector<8x31xf32> -> vector<8x32xf32>
    %122 = vector.broadcast %13 : vector<1x32xf32> to vector<8x32xf32>
    %123 = arith.mulf %122, %121 : vector<8x32xf32>
    %124 = vector.extract_strided_slice %32 {offsets = [0, 1], sizes = [8, 31], strides = [1, 1]} : vector<8x32xf32> to vector<8x31xf32>
    %125 = vector.extract_strided_slice %32 {offsets = [0, 31], sizes = [8, 1], strides = [1, 1]} : vector<8x32xf32> to vector<8x1xf32>
    %126 = tpu.concatenate %124, %125 in 1 : vector<8x31xf32>, vector<8x1xf32> -> vector<8x32xf32>
    %127 = vector.broadcast %16 : vector<1x32xf32> to vector<8x32xf32>
    %128 = arith.mulf %127, %126 : vector<8x32xf32>
    %129 = vector.extract_strided_slice %34 {offsets = [0, 0], sizes = [8, 1], strides = [1, 1]} : vector<8x32xf32> to vector<8x1xf32>
    %130 = vector.extract_strided_slice %34 {offsets = [0, 0], sizes = [8, 31], strides = [1, 1]} : vector<8x32xf32> to vector<8x31xf32>
    %131 = tpu.concatenate %129, %130 in 1 : vector<8x1xf32>, vector<8x31xf32> -> vector<8x32xf32>
    %132 = vector.broadcast %13 : vector<1x32xf32> to vector<8x32xf32>
    %133 = arith.mulf %132, %131 : vector<8x32xf32>
    %134 = vector.extract_strided_slice %34 {offsets = [0, 1], sizes = [8, 31], strides = [1, 1]} : vector<8x32xf32> to vector<8x31xf32>
    %135 = vector.extract_strided_slice %34 {offsets = [0, 31], sizes = [8, 1], strides = [1, 1]} : vector<8x32xf32> to vector<8x1xf32>
    %136 = tpu.concatenate %134, %135 in 1 : vector<8x31xf32>, vector<8x1xf32> -> vector<8x32xf32>
    %137 = vector.broadcast %16 : vector<1x32xf32> to vector<8x32xf32>
    %138 = arith.mulf %137, %136 : vector<8x32xf32>
    %139 = vector.extract_strided_slice %36 {offsets = [0, 0], sizes = [8, 1], strides = [1, 1]} : vector<8x32xf32> to vector<8x1xf32>
    %140 = vector.extract_strided_slice %36 {offsets = [0, 0], sizes = [8, 31], strides = [1, 1]} : vector<8x32xf32> to vector<8x31xf32>
    %141 = tpu.concatenate %139, %140 in 1 : vector<8x1xf32>, vector<8x31xf32> -> vector<8x32xf32>
    %142 = vector.broadcast %13 : vector<1x32xf32> to vector<8x32xf32>
    %143 = arith.mulf %142, %141 : vector<8x32xf32>
    %144 = vector.extract_strided_slice %36 {offsets = [0, 1], sizes = [8, 31], strides = [1, 1]} : vector<8x32xf32> to vector<8x31xf32>
    %145 = vector.extract_strided_slice %36 {offsets = [0, 31], sizes = [8, 1], strides = [1, 1]} : vector<8x32xf32> to vector<8x1xf32>
    %146 = tpu.concatenate %144, %145 in 1 : vector<8x31xf32>, vector<8x1xf32> -> vector<8x32xf32>
    %147 = vector.broadcast %16 : vector<1x32xf32> to vector<8x32xf32>
    %148 = arith.mulf %147, %146 : vector<8x32xf32>
    %149 = vector.extract_strided_slice %38 {offsets = [0, 0], sizes = [8, 1], strides = [1, 1]} : vector<8x32xf32> to vector<8x1xf32>
    %150 = vector.extract_strided_slice %38 {offsets = [0, 0], sizes = [8, 31], strides = [1, 1]} : vector<8x32xf32> to vector<8x31xf32>
    %151 = tpu.concatenate %149, %150 in 1 : vector<8x1xf32>, vector<8x31xf32> -> vector<8x32xf32>
    %152 = vector.broadcast %13 : vector<1x32xf32> to vector<8x32xf32>
    %153 = arith.mulf %152, %151 : vector<8x32xf32>
    %154 = vector.extract_strided_slice %38 {offsets = [0, 1], sizes = [8, 31], strides = [1, 1]} : vector<8x32xf32> to vector<8x31xf32>
    %155 = vector.extract_strided_slice %38 {offsets = [0, 31], sizes = [8, 1], strides = [1, 1]} : vector<8x32xf32> to vector<8x1xf32>
    %156 = tpu.concatenate %154, %155 in 1 : vector<8x31xf32>, vector<8x1xf32> -> vector<8x32xf32>
    %157 = vector.broadcast %16 : vector<1x32xf32> to vector<8x32xf32>
    %158 = arith.mulf %157, %156 : vector<8x32xf32>
    %159 = vector.extract_strided_slice %40 {offsets = [0, 0], sizes = [8, 1], strides = [1, 1]} : vector<8x32xf32> to vector<8x1xf32>
    %160 = vector.extract_strided_slice %40 {offsets = [0, 0], sizes = [8, 31], strides = [1, 1]} : vector<8x32xf32> to vector<8x31xf32>
    %161 = tpu.concatenate %159, %160 in 1 : vector<8x1xf32>, vector<8x31xf32> -> vector<8x32xf32>
    %162 = vector.broadcast %13 : vector<1x32xf32> to vector<8x32xf32>
    %163 = arith.mulf %162, %161 : vector<8x32xf32>
    %164 = vector.extract_strided_slice %40 {offsets = [0, 1], sizes = [8, 31], strides = [1, 1]} : vector<8x32xf32> to vector<8x31xf32>
    %165 = vector.extract_strided_slice %40 {offsets = [0, 31], sizes = [8, 1], strides = [1, 1]} : vector<8x32xf32> to vector<8x1xf32>
    %166 = tpu.concatenate %164, %165 in 1 : vector<8x31xf32>, vector<8x1xf32> -> vector<8x32xf32>
    %167 = vector.broadcast %16 : vector<1x32xf32> to vector<8x32xf32>
    %168 = arith.mulf %167, %166 : vector<8x32xf32>
    %169 = vector.extract_strided_slice %42 {offsets = [0, 0], sizes = [8, 1], strides = [1, 1]} : vector<8x32xf32> to vector<8x1xf32>
    %170 = vector.extract_strided_slice %42 {offsets = [0, 0], sizes = [8, 31], strides = [1, 1]} : vector<8x32xf32> to vector<8x31xf32>
    %171 = tpu.concatenate %169, %170 in 1 : vector<8x1xf32>, vector<8x31xf32> -> vector<8x32xf32>
    %172 = vector.broadcast %13 : vector<1x32xf32> to vector<8x32xf32>
    %173 = arith.mulf %172, %171 : vector<8x32xf32>
    %174 = vector.extract_strided_slice %42 {offsets = [0, 1], sizes = [8, 31], strides = [1, 1]} : vector<8x32xf32> to vector<8x31xf32>
    %175 = vector.extract_strided_slice %42 {offsets = [0, 31], sizes = [8, 1], strides = [1, 1]} : vector<8x32xf32> to vector<8x1xf32>
    %176 = tpu.concatenate %174, %175 in 1 : vector<8x31xf32>, vector<8x1xf32> -> vector<8x32xf32>
    %177 = vector.broadcast %16 : vector<1x32xf32> to vector<8x32xf32>
    %178 = arith.mulf %177, %176 : vector<8x32xf32>
    %179 = vector.extract_strided_slice %44 {offsets = [0, 0], sizes = [8, 1], strides = [1, 1]} : vector<8x32xf32> to vector<8x1xf32>
    %180 = vector.extract_strided_slice %44 {offsets = [0, 0], sizes = [8, 31], strides = [1, 1]} : vector<8x32xf32> to vector<8x31xf32>
    %181 = tpu.concatenate %179, %180 in 1 : vector<8x1xf32>, vector<8x31xf32> -> vector<8x32xf32>
    %182 = vector.broadcast %13 : vector<1x32xf32> to vector<8x32xf32>
    %183 = arith.mulf %182, %181 : vector<8x32xf32>
    %184 = vector.extract_strided_slice %44 {offsets = [0, 1], sizes = [8, 31], strides = [1, 1]} : vector<8x32xf32> to vector<8x31xf32>
    %185 = vector.extract_strided_slice %44 {offsets = [0, 31], sizes = [8, 1], strides = [1, 1]} : vector<8x32xf32> to vector<8x1xf32>
    %186 = tpu.concatenate %184, %185 in 1 : vector<8x31xf32>, vector<8x1xf32> -> vector<8x32xf32>
    %187 = vector.broadcast %16 : vector<1x32xf32> to vector<8x32xf32>
    %188 = arith.mulf %187, %186 : vector<8x32xf32>
    %189 = vector.extract_strided_slice %46 {offsets = [0, 0], sizes = [8, 1], strides = [1, 1]} : vector<8x32xf32> to vector<8x1xf32>
    %190 = vector.extract_strided_slice %46 {offsets = [0, 0], sizes = [8, 31], strides = [1, 1]} : vector<8x32xf32> to vector<8x31xf32>
    %191 = tpu.concatenate %189, %190 in 1 : vector<8x1xf32>, vector<8x31xf32> -> vector<8x32xf32>
    %192 = vector.broadcast %13 : vector<1x32xf32> to vector<8x32xf32>
    %193 = arith.mulf %192, %191 : vector<8x32xf32>
    %194 = vector.extract_strided_slice %46 {offsets = [0, 1], sizes = [8, 31], strides = [1, 1]} : vector<8x32xf32> to vector<8x31xf32>
    %195 = vector.extract_strided_slice %46 {offsets = [0, 31], sizes = [8, 1], strides = [1, 1]} : vector<8x32xf32> to vector<8x1xf32>
    %196 = tpu.concatenate %194, %195 in 1 : vector<8x31xf32>, vector<8x1xf32> -> vector<8x32xf32>
    %197 = vector.broadcast %16 : vector<1x32xf32> to vector<8x32xf32>
    %198 = arith.mulf %197, %196 : vector<8x32xf32>
    %199 = vector.extract_strided_slice %48 {offsets = [0, 0], sizes = [8, 1], strides = [1, 1]} : vector<8x32xf32> to vector<8x1xf32>
    %200 = vector.extract_strided_slice %48 {offsets = [0, 0], sizes = [8, 31], strides = [1, 1]} : vector<8x32xf32> to vector<8x31xf32>
    %201 = tpu.concatenate %199, %200 in 1 : vector<8x1xf32>, vector<8x31xf32> -> vector<8x32xf32>
    %202 = vector.broadcast %13 : vector<1x32xf32> to vector<8x32xf32>
    %203 = arith.mulf %202, %201 : vector<8x32xf32>
    %204 = vector.extract_strided_slice %48 {offsets = [0, 1], sizes = [8, 31], strides = [1, 1]} : vector<8x32xf32> to vector<8x31xf32>
    %205 = vector.extract_strided_slice %48 {offsets = [0, 31], sizes = [8, 1], strides = [1, 1]} : vector<8x32xf32> to vector<8x1xf32>
    %206 = tpu.concatenate %204, %205 in 1 : vector<8x31xf32>, vector<8x1xf32> -> vector<8x32xf32>
    %207 = vector.broadcast %16 : vector<1x32xf32> to vector<8x32xf32>
    %208 = arith.mulf %207, %206 : vector<8x32xf32>
    %cst_51 = arith.constant 0.000000e+00 : f32
    %209 = vector.broadcast %cst_51 : f32 to vector<8x32xf32>
    %210 = tpu.concatenate %209, %209, %209, %53, %18, %58, %63, %20, %68 in 0 : vector<8x32xf32>, vector<8x32xf32>, vector<8x32xf32>, vector<8x32xf32>, vector<8x32xf32>, vector<8x32xf32>, vector<8x32xf32>, vector<8x32xf32>, vector<8x32xf32> -> vector<72x32xf32>
    %211 = tpu.concatenate %63, %20, %68, %73, %22, %78, %83, %24, %88 in 0 : vector<8x32xf32>, vector<8x32xf32>, vector<8x32xf32>, vector<8x32xf32>, vector<8x32xf32>, vector<8x32xf32>, vector<8x32xf32>, vector<8x32xf32>, vector<8x32xf32> -> vector<72x32xf32>
    %212 = tpu.concatenate %83, %24, %88, %93, %26, %98, %103, %28, %108 in 0 : vector<8x32xf32>, vector<8x32xf32>, vector<8x32xf32>, vector<8x32xf32>, vector<8x32xf32>, vector<8x32xf32>, vector<8x32xf32>, vector<8x32xf32>, vector<8x32xf32> -> vector<72x32xf32>
    %213 = tpu.concatenate %103, %28, %108, %113, %30, %118, %123, %32, %128 in 0 : vector<8x32xf32>, vector<8x32xf32>, vector<8x32xf32>, vector<8x32xf32>, vector<8x32xf32>, vector<8x32xf32>, vector<8x32xf32>, vector<8x32xf32>, vector<8x32xf32> -> vector<72x32xf32>
    %214 = tpu.concatenate %123, %32, %128, %133, %34, %138, %143, %36, %148 in 0 : vector<8x32xf32>, vector<8x32xf32>, vector<8x32xf32>, vector<8x32xf32>, vector<8x32xf32>, vector<8x32xf32>, vector<8x32xf32>, vector<8x32xf32>, vector<8x32xf32> -> vector<72x32xf32>
    %215 = tpu.concatenate %143, %36, %148, %153, %38, %158, %163, %40, %168 in 0 : vector<8x32xf32>, vector<8x32xf32>, vector<8x32xf32>, vector<8x32xf32>, vector<8x32xf32>, vector<8x32xf32>, vector<8x32xf32>, vector<8x32xf32>, vector<8x32xf32> -> vector<72x32xf32>
    %216 = tpu.concatenate %163, %40, %168, %173, %42, %178, %183, %44, %188 in 0 : vector<8x32xf32>, vector<8x32xf32>, vector<8x32xf32>, vector<8x32xf32>, vector<8x32xf32>, vector<8x32xf32>, vector<8x32xf32>, vector<8x32xf32>, vector<8x32xf32> -> vector<72x32xf32>
    %217 = tpu.concatenate %183, %44, %188, %193, %46, %198, %203, %48, %208 in 0 : vector<8x32xf32>, vector<8x32xf32>, vector<8x32xf32>, vector<8x32xf32>, vector<8x32xf32>, vector<8x32xf32>, vector<8x32xf32>, vector<8x32xf32>, vector<8x32xf32> -> vector<72x32xf32>
    %218 = tpu.concatenate %210, %211, %212, %213, %214, %215, %216, %217 in 1 : vector<72x32xf32>, vector<72x32xf32>, vector<72x32xf32>, vector<72x32xf32>, vector<72x32xf32>, vector<72x32xf32>, vector<72x32xf32>, vector<72x32xf32> -> vector<72x256xf32>
    %c0_52 = arith.constant 0 : index
    %c0_53 = arith.constant 0 : index
    %219 = vector.load %arg2[%c0_52, %c0_53] : memref<4x72xf32, #tpu.memory_space<vmem>>, vector<4x72xf32>
    %cst_54 = arith.constant dense<0.000000e+00> : vector<4x256xf32>
    %220 = tpu.matmul %219, %218, %cst_54 {dimension_numbers = #tpu.dot_dimension_numbers<[1], [0], [0], [1], [0, 0, 1, 1], [], []>} : vector<4x72xf32>, vector<72x256xf32>, vector<4x256xf32> -> vector<4x256xf32>
    %c0_55 = arith.constant 0 : index
    %c0_56 = arith.constant 0 : index
    %221 = vector.load %arg3[%c0_55, %c0_56] : memref<4x1xf32, #tpu.memory_space<vmem>>, vector<4x1xf32>
    %222 = vector.broadcast %221 : vector<4x1xf32> to vector<4x256xf32>
    %223 = arith.mulf %220, %222 : vector<4x256xf32>
    %c0_57 = arith.constant 0 : index
    %c0_58 = arith.constant 0 : index
    %224 = vector.load %arg4[%c0_57, %c0_58] : memref<4x1xf32, #tpu.memory_space<vmem>>, vector<4x1xf32>
    %225 = vector.broadcast %224 : vector<4x1xf32> to vector<4x256xf32>
    %226 = arith.addf %223, %225 : vector<4x256xf32>
    %cst_59 = arith.constant 0.000000e+00 : f32
    %227 = vector.broadcast %cst_59 : f32 to vector<4x256xf32>
    %228 = arith.maximumf %226, %227 : vector<4x256xf32>
    %229 = vector.extract_strided_slice %228 {offsets = [0, 0], sizes = [4, 32], strides = [1, 1]} : vector<4x256xf32> to vector<4x32xf32>
    %230 = vector.extract_strided_slice %228 {offsets = [0, 32], sizes = [4, 32], strides = [1, 1]} : vector<4x256xf32> to vector<4x32xf32>
    %231 = vector.extract_strided_slice %228 {offsets = [0, 64], sizes = [4, 32], strides = [1, 1]} : vector<4x256xf32> to vector<4x32xf32>
    %232 = vector.extract_strided_slice %228 {offsets = [0, 96], sizes = [4, 32], strides = [1, 1]} : vector<4x256xf32> to vector<4x32xf32>
    %233 = vector.extract_strided_slice %228 {offsets = [0, 128], sizes = [4, 32], strides = [1, 1]} : vector<4x256xf32> to vector<4x32xf32>
    %234 = vector.extract_strided_slice %228 {offsets = [0, 160], sizes = [4, 32], strides = [1, 1]} : vector<4x256xf32> to vector<4x32xf32>
    %235 = vector.extract_strided_slice %228 {offsets = [0, 192], sizes = [4, 32], strides = [1, 1]} : vector<4x256xf32> to vector<4x32xf32>
    %236 = vector.extract_strided_slice %228 {offsets = [0, 224], sizes = [4, 32], strides = [1, 1]} : vector<4x256xf32> to vector<4x32xf32>
    %237 = vector.extract_strided_slice %229 {offsets = [0, 0], sizes = [4, 1], strides = [1, 1]} : vector<4x32xf32> to vector<4x1xf32>
    %238 = vector.extract_strided_slice %229 {offsets = [0, 0], sizes = [4, 31], strides = [1, 1]} : vector<4x32xf32> to vector<4x31xf32>
    %239 = tpu.concatenate %237, %238 in 1 : vector<4x1xf32>, vector<4x31xf32> -> vector<4x32xf32>
    %240 = vector.broadcast %13 : vector<1x32xf32> to vector<4x32xf32>
    %241 = arith.mulf %240, %239 : vector<4x32xf32>
    %242 = vector.extract_strided_slice %229 {offsets = [0, 1], sizes = [4, 31], strides = [1, 1]} : vector<4x32xf32> to vector<4x31xf32>
    %243 = vector.extract_strided_slice %229 {offsets = [0, 31], sizes = [4, 1], strides = [1, 1]} : vector<4x32xf32> to vector<4x1xf32>
    %244 = tpu.concatenate %242, %243 in 1 : vector<4x31xf32>, vector<4x1xf32> -> vector<4x32xf32>
    %245 = vector.broadcast %16 : vector<1x32xf32> to vector<4x32xf32>
    %246 = arith.mulf %245, %244 : vector<4x32xf32>
    %247 = vector.extract_strided_slice %230 {offsets = [0, 0], sizes = [4, 1], strides = [1, 1]} : vector<4x32xf32> to vector<4x1xf32>
    %248 = vector.extract_strided_slice %230 {offsets = [0, 0], sizes = [4, 31], strides = [1, 1]} : vector<4x32xf32> to vector<4x31xf32>
    %249 = tpu.concatenate %247, %248 in 1 : vector<4x1xf32>, vector<4x31xf32> -> vector<4x32xf32>
    %250 = vector.broadcast %13 : vector<1x32xf32> to vector<4x32xf32>
    %251 = arith.mulf %250, %249 : vector<4x32xf32>
    %252 = vector.extract_strided_slice %230 {offsets = [0, 1], sizes = [4, 31], strides = [1, 1]} : vector<4x32xf32> to vector<4x31xf32>
    %253 = vector.extract_strided_slice %230 {offsets = [0, 31], sizes = [4, 1], strides = [1, 1]} : vector<4x32xf32> to vector<4x1xf32>
    %254 = tpu.concatenate %252, %253 in 1 : vector<4x31xf32>, vector<4x1xf32> -> vector<4x32xf32>
    %255 = vector.broadcast %16 : vector<1x32xf32> to vector<4x32xf32>
    %256 = arith.mulf %255, %254 : vector<4x32xf32>
    %257 = vector.extract_strided_slice %231 {offsets = [0, 0], sizes = [4, 1], strides = [1, 1]} : vector<4x32xf32> to vector<4x1xf32>
    %258 = vector.extract_strided_slice %231 {offsets = [0, 0], sizes = [4, 31], strides = [1, 1]} : vector<4x32xf32> to vector<4x31xf32>
    %259 = tpu.concatenate %257, %258 in 1 : vector<4x1xf32>, vector<4x31xf32> -> vector<4x32xf32>
    %260 = vector.broadcast %13 : vector<1x32xf32> to vector<4x32xf32>
    %261 = arith.mulf %260, %259 : vector<4x32xf32>
    %262 = vector.extract_strided_slice %231 {offsets = [0, 1], sizes = [4, 31], strides = [1, 1]} : vector<4x32xf32> to vector<4x31xf32>
    %263 = vector.extract_strided_slice %231 {offsets = [0, 31], sizes = [4, 1], strides = [1, 1]} : vector<4x32xf32> to vector<4x1xf32>
    %264 = tpu.concatenate %262, %263 in 1 : vector<4x31xf32>, vector<4x1xf32> -> vector<4x32xf32>
    %265 = vector.broadcast %16 : vector<1x32xf32> to vector<4x32xf32>
    %266 = arith.mulf %265, %264 : vector<4x32xf32>
    %267 = vector.extract_strided_slice %232 {offsets = [0, 0], sizes = [4, 1], strides = [1, 1]} : vector<4x32xf32> to vector<4x1xf32>
    %268 = vector.extract_strided_slice %232 {offsets = [0, 0], sizes = [4, 31], strides = [1, 1]} : vector<4x32xf32> to vector<4x31xf32>
    %269 = tpu.concatenate %267, %268 in 1 : vector<4x1xf32>, vector<4x31xf32> -> vector<4x32xf32>
    %270 = vector.broadcast %13 : vector<1x32xf32> to vector<4x32xf32>
    %271 = arith.mulf %270, %269 : vector<4x32xf32>
    %272 = vector.extract_strided_slice %232 {offsets = [0, 1], sizes = [4, 31], strides = [1, 1]} : vector<4x32xf32> to vector<4x31xf32>
    %273 = vector.extract_strided_slice %232 {offsets = [0, 31], sizes = [4, 1], strides = [1, 1]} : vector<4x32xf32> to vector<4x1xf32>
    %274 = tpu.concatenate %272, %273 in 1 : vector<4x31xf32>, vector<4x1xf32> -> vector<4x32xf32>
    %275 = vector.broadcast %16 : vector<1x32xf32> to vector<4x32xf32>
    %276 = arith.mulf %275, %274 : vector<4x32xf32>
    %277 = vector.extract_strided_slice %233 {offsets = [0, 0], sizes = [4, 1], strides = [1, 1]} : vector<4x32xf32> to vector<4x1xf32>
    %278 = vector.extract_strided_slice %233 {offsets = [0, 0], sizes = [4, 31], strides = [1, 1]} : vector<4x32xf32> to vector<4x31xf32>
    %279 = tpu.concatenate %277, %278 in 1 : vector<4x1xf32>, vector<4x31xf32> -> vector<4x32xf32>
    %280 = vector.broadcast %13 : vector<1x32xf32> to vector<4x32xf32>
    %281 = arith.mulf %280, %279 : vector<4x32xf32>
    %282 = vector.extract_strided_slice %233 {offsets = [0, 1], sizes = [4, 31], strides = [1, 1]} : vector<4x32xf32> to vector<4x31xf32>
    %283 = vector.extract_strided_slice %233 {offsets = [0, 31], sizes = [4, 1], strides = [1, 1]} : vector<4x32xf32> to vector<4x1xf32>
    %284 = tpu.concatenate %282, %283 in 1 : vector<4x31xf32>, vector<4x1xf32> -> vector<4x32xf32>
    %285 = vector.broadcast %16 : vector<1x32xf32> to vector<4x32xf32>
    %286 = arith.mulf %285, %284 : vector<4x32xf32>
    %287 = vector.extract_strided_slice %234 {offsets = [0, 0], sizes = [4, 1], strides = [1, 1]} : vector<4x32xf32> to vector<4x1xf32>
    %288 = vector.extract_strided_slice %234 {offsets = [0, 0], sizes = [4, 31], strides = [1, 1]} : vector<4x32xf32> to vector<4x31xf32>
    %289 = tpu.concatenate %287, %288 in 1 : vector<4x1xf32>, vector<4x31xf32> -> vector<4x32xf32>
    %290 = vector.broadcast %13 : vector<1x32xf32> to vector<4x32xf32>
    %291 = arith.mulf %290, %289 : vector<4x32xf32>
    %292 = vector.extract_strided_slice %234 {offsets = [0, 1], sizes = [4, 31], strides = [1, 1]} : vector<4x32xf32> to vector<4x31xf32>
    %293 = vector.extract_strided_slice %234 {offsets = [0, 31], sizes = [4, 1], strides = [1, 1]} : vector<4x32xf32> to vector<4x1xf32>
    %294 = tpu.concatenate %292, %293 in 1 : vector<4x31xf32>, vector<4x1xf32> -> vector<4x32xf32>
    %295 = vector.broadcast %16 : vector<1x32xf32> to vector<4x32xf32>
    %296 = arith.mulf %295, %294 : vector<4x32xf32>
    %297 = vector.extract_strided_slice %235 {offsets = [0, 0], sizes = [4, 1], strides = [1, 1]} : vector<4x32xf32> to vector<4x1xf32>
    %298 = vector.extract_strided_slice %235 {offsets = [0, 0], sizes = [4, 31], strides = [1, 1]} : vector<4x32xf32> to vector<4x31xf32>
    %299 = tpu.concatenate %297, %298 in 1 : vector<4x1xf32>, vector<4x31xf32> -> vector<4x32xf32>
    %300 = vector.broadcast %13 : vector<1x32xf32> to vector<4x32xf32>
    %301 = arith.mulf %300, %299 : vector<4x32xf32>
    %302 = vector.extract_strided_slice %235 {offsets = [0, 1], sizes = [4, 31], strides = [1, 1]} : vector<4x32xf32> to vector<4x31xf32>
    %303 = vector.extract_strided_slice %235 {offsets = [0, 31], sizes = [4, 1], strides = [1, 1]} : vector<4x32xf32> to vector<4x1xf32>
    %304 = tpu.concatenate %302, %303 in 1 : vector<4x31xf32>, vector<4x1xf32> -> vector<4x32xf32>
    %305 = vector.broadcast %16 : vector<1x32xf32> to vector<4x32xf32>
    %306 = arith.mulf %305, %304 : vector<4x32xf32>
    %307 = vector.extract_strided_slice %236 {offsets = [0, 0], sizes = [4, 1], strides = [1, 1]} : vector<4x32xf32> to vector<4x1xf32>
    %308 = vector.extract_strided_slice %236 {offsets = [0, 0], sizes = [4, 31], strides = [1, 1]} : vector<4x32xf32> to vector<4x31xf32>
    %309 = tpu.concatenate %307, %308 in 1 : vector<4x1xf32>, vector<4x31xf32> -> vector<4x32xf32>
    %310 = vector.broadcast %13 : vector<1x32xf32> to vector<4x32xf32>
    %311 = arith.mulf %310, %309 : vector<4x32xf32>
    %312 = vector.extract_strided_slice %236 {offsets = [0, 1], sizes = [4, 31], strides = [1, 1]} : vector<4x32xf32> to vector<4x31xf32>
    %313 = vector.extract_strided_slice %236 {offsets = [0, 31], sizes = [4, 1], strides = [1, 1]} : vector<4x32xf32> to vector<4x1xf32>
    %314 = tpu.concatenate %312, %313 in 1 : vector<4x31xf32>, vector<4x1xf32> -> vector<4x32xf32>
    %315 = vector.broadcast %16 : vector<1x32xf32> to vector<4x32xf32>
    %316 = arith.mulf %315, %314 : vector<4x32xf32>
    %cst_60 = arith.constant 0.000000e+00 : f32
    %317 = vector.broadcast %cst_60 : f32 to vector<4x32xf32>
    %318 = tpu.concatenate %317, %317, %317, %241, %229, %246, %251, %230, %256 in 0 : vector<4x32xf32>, vector<4x32xf32>, vector<4x32xf32>, vector<4x32xf32>, vector<4x32xf32>, vector<4x32xf32>, vector<4x32xf32>, vector<4x32xf32>, vector<4x32xf32> -> vector<36x32xf32>
    %319 = tpu.concatenate %251, %230, %256, %261, %231, %266, %271, %232, %276 in 0 : vector<4x32xf32>, vector<4x32xf32>, vector<4x32xf32>, vector<4x32xf32>, vector<4x32xf32>, vector<4x32xf32>, vector<4x32xf32>, vector<4x32xf32>, vector<4x32xf32> -> vector<36x32xf32>
    %320 = tpu.concatenate %271, %232, %276, %281, %233, %286, %291, %234, %296 in 0 : vector<4x32xf32>, vector<4x32xf32>, vector<4x32xf32>, vector<4x32xf32>, vector<4x32xf32>, vector<4x32xf32>, vector<4x32xf32>, vector<4x32xf32>, vector<4x32xf32> -> vector<36x32xf32>
    %321 = tpu.concatenate %291, %234, %296, %301, %235, %306, %311, %236, %316 in 0 : vector<4x32xf32>, vector<4x32xf32>, vector<4x32xf32>, vector<4x32xf32>, vector<4x32xf32>, vector<4x32xf32>, vector<4x32xf32>, vector<4x32xf32>, vector<4x32xf32> -> vector<36x32xf32>
    %322 = tpu.concatenate %318, %319, %320, %321 in 1 : vector<36x32xf32>, vector<36x32xf32>, vector<36x32xf32>, vector<36x32xf32> -> vector<36x128xf32>
    %c0_61 = arith.constant 0 : index
    %c0_62 = arith.constant 0 : index
    %323 = vector.load %arg5[%c0_61, %c0_62] : memref<4x36xf32, #tpu.memory_space<vmem>>, vector<4x36xf32>
    %cst_63 = arith.constant dense<0.000000e+00> : vector<4x128xf32>
    %324 = tpu.matmul %323, %322, %cst_63 {dimension_numbers = #tpu.dot_dimension_numbers<[1], [0], [0], [1], [0, 0, 1, 1], [], []>} : vector<4x36xf32>, vector<36x128xf32>, vector<4x128xf32> -> vector<4x128xf32>
    %c0_64 = arith.constant 0 : index
    %c0_65 = arith.constant 0 : index
    %325 = vector.load %arg6[%c0_64, %c0_65] : memref<4x1xf32, #tpu.memory_space<vmem>>, vector<4x1xf32>
    %326 = vector.broadcast %325 : vector<4x1xf32> to vector<4x128xf32>
    %327 = arith.mulf %324, %326 : vector<4x128xf32>
    %c0_66 = arith.constant 0 : index
    %c0_67 = arith.constant 0 : index
    %328 = vector.load %arg7[%c0_66, %c0_67] : memref<4x1xf32, #tpu.memory_space<vmem>>, vector<4x1xf32>
    %329 = vector.broadcast %328 : vector<4x1xf32> to vector<4x128xf32>
    %330 = arith.addf %327, %329 : vector<4x128xf32>
    %cst_68 = arith.constant 0.000000e+00 : f32
    %331 = vector.broadcast %cst_68 : f32 to vector<4x128xf32>
    %332 = arith.maximumf %330, %331 : vector<4x128xf32>
    %333 = vector.extract_strided_slice %332 {offsets = [0, 0], sizes = [4, 32], strides = [1, 1]} : vector<4x128xf32> to vector<4x32xf32>
    %334 = vector.extract_strided_slice %332 {offsets = [0, 32], sizes = [4, 32], strides = [1, 1]} : vector<4x128xf32> to vector<4x32xf32>
    %335 = vector.extract_strided_slice %332 {offsets = [0, 64], sizes = [4, 32], strides = [1, 1]} : vector<4x128xf32> to vector<4x32xf32>
    %336 = vector.extract_strided_slice %332 {offsets = [0, 96], sizes = [4, 32], strides = [1, 1]} : vector<4x128xf32> to vector<4x32xf32>
    %337 = vector.extract_strided_slice %333 {offsets = [0, 0], sizes = [4, 1], strides = [1, 1]} : vector<4x32xf32> to vector<4x1xf32>
    %338 = vector.extract_strided_slice %333 {offsets = [0, 0], sizes = [4, 31], strides = [1, 1]} : vector<4x32xf32> to vector<4x31xf32>
    %339 = tpu.concatenate %337, %338 in 1 : vector<4x1xf32>, vector<4x31xf32> -> vector<4x32xf32>
    %340 = vector.broadcast %13 : vector<1x32xf32> to vector<4x32xf32>
    %341 = arith.mulf %340, %339 : vector<4x32xf32>
    %342 = vector.extract_strided_slice %333 {offsets = [0, 1], sizes = [4, 31], strides = [1, 1]} : vector<4x32xf32> to vector<4x31xf32>
    %343 = vector.extract_strided_slice %333 {offsets = [0, 31], sizes = [4, 1], strides = [1, 1]} : vector<4x32xf32> to vector<4x1xf32>
    %344 = tpu.concatenate %342, %343 in 1 : vector<4x31xf32>, vector<4x1xf32> -> vector<4x32xf32>
    %345 = vector.broadcast %16 : vector<1x32xf32> to vector<4x32xf32>
    %346 = arith.mulf %345, %344 : vector<4x32xf32>
    %347 = vector.extract_strided_slice %334 {offsets = [0, 0], sizes = [4, 1], strides = [1, 1]} : vector<4x32xf32> to vector<4x1xf32>
    %348 = vector.extract_strided_slice %334 {offsets = [0, 0], sizes = [4, 31], strides = [1, 1]} : vector<4x32xf32> to vector<4x31xf32>
    %349 = tpu.concatenate %347, %348 in 1 : vector<4x1xf32>, vector<4x31xf32> -> vector<4x32xf32>
    %350 = vector.broadcast %13 : vector<1x32xf32> to vector<4x32xf32>
    %351 = arith.mulf %350, %349 : vector<4x32xf32>
    %352 = vector.extract_strided_slice %334 {offsets = [0, 1], sizes = [4, 31], strides = [1, 1]} : vector<4x32xf32> to vector<4x31xf32>
    %353 = vector.extract_strided_slice %334 {offsets = [0, 31], sizes = [4, 1], strides = [1, 1]} : vector<4x32xf32> to vector<4x1xf32>
    %354 = tpu.concatenate %352, %353 in 1 : vector<4x31xf32>, vector<4x1xf32> -> vector<4x32xf32>
    %355 = vector.broadcast %16 : vector<1x32xf32> to vector<4x32xf32>
    %356 = arith.mulf %355, %354 : vector<4x32xf32>
    %357 = vector.extract_strided_slice %335 {offsets = [0, 0], sizes = [4, 1], strides = [1, 1]} : vector<4x32xf32> to vector<4x1xf32>
    %358 = vector.extract_strided_slice %335 {offsets = [0, 0], sizes = [4, 31], strides = [1, 1]} : vector<4x32xf32> to vector<4x31xf32>
    %359 = tpu.concatenate %357, %358 in 1 : vector<4x1xf32>, vector<4x31xf32> -> vector<4x32xf32>
    %360 = vector.broadcast %13 : vector<1x32xf32> to vector<4x32xf32>
    %361 = arith.mulf %360, %359 : vector<4x32xf32>
    %362 = vector.extract_strided_slice %335 {offsets = [0, 1], sizes = [4, 31], strides = [1, 1]} : vector<4x32xf32> to vector<4x31xf32>
    %363 = vector.extract_strided_slice %335 {offsets = [0, 31], sizes = [4, 1], strides = [1, 1]} : vector<4x32xf32> to vector<4x1xf32>
    %364 = tpu.concatenate %362, %363 in 1 : vector<4x31xf32>, vector<4x1xf32> -> vector<4x32xf32>
    %365 = vector.broadcast %16 : vector<1x32xf32> to vector<4x32xf32>
    %366 = arith.mulf %365, %364 : vector<4x32xf32>
    %367 = vector.extract_strided_slice %336 {offsets = [0, 0], sizes = [4, 1], strides = [1, 1]} : vector<4x32xf32> to vector<4x1xf32>
    %368 = vector.extract_strided_slice %336 {offsets = [0, 0], sizes = [4, 31], strides = [1, 1]} : vector<4x32xf32> to vector<4x31xf32>
    %369 = tpu.concatenate %367, %368 in 1 : vector<4x1xf32>, vector<4x31xf32> -> vector<4x32xf32>
    %370 = vector.broadcast %13 : vector<1x32xf32> to vector<4x32xf32>
    %371 = arith.mulf %370, %369 : vector<4x32xf32>
    %372 = vector.extract_strided_slice %336 {offsets = [0, 1], sizes = [4, 31], strides = [1, 1]} : vector<4x32xf32> to vector<4x31xf32>
    %373 = vector.extract_strided_slice %336 {offsets = [0, 31], sizes = [4, 1], strides = [1, 1]} : vector<4x32xf32> to vector<4x1xf32>
    %374 = tpu.concatenate %372, %373 in 1 : vector<4x31xf32>, vector<4x1xf32> -> vector<4x32xf32>
    %375 = vector.broadcast %16 : vector<1x32xf32> to vector<4x32xf32>
    %376 = arith.mulf %375, %374 : vector<4x32xf32>
    %cst_69 = arith.constant 0.000000e+00 : f32
    %377 = vector.broadcast %cst_69 : f32 to vector<4x32xf32>
    %378 = tpu.concatenate %377, %377, %377, %341, %333, %346, %351, %334, %356 in 0 : vector<4x32xf32>, vector<4x32xf32>, vector<4x32xf32>, vector<4x32xf32>, vector<4x32xf32>, vector<4x32xf32>, vector<4x32xf32>, vector<4x32xf32>, vector<4x32xf32> -> vector<36x32xf32>
    %379 = tpu.concatenate %351, %334, %356, %361, %335, %366, %371, %336, %376 in 0 : vector<4x32xf32>, vector<4x32xf32>, vector<4x32xf32>, vector<4x32xf32>, vector<4x32xf32>, vector<4x32xf32>, vector<4x32xf32>, vector<4x32xf32>, vector<4x32xf32> -> vector<36x32xf32>
    %380 = tpu.concatenate %378, %379 in 1 : vector<36x32xf32>, vector<36x32xf32> -> vector<36x64xf32>
    %c0_70 = arith.constant 0 : index
    %c0_71 = arith.constant 0 : index
    %381 = vector.load %arg8[%c0_70, %c0_71] : memref<2x36xf32, #tpu.memory_space<vmem>>, vector<2x36xf32>
    %cst_72 = arith.constant dense<0.000000e+00> : vector<2x64xf32>
    %382 = tpu.matmul %381, %380, %cst_72 {dimension_numbers = #tpu.dot_dimension_numbers<[1], [0], [0], [1], [0, 0, 1, 1], [], []>} : vector<2x36xf32>, vector<36x64xf32>, vector<2x64xf32> -> vector<2x64xf32>
    %c0_73 = arith.constant 0 : index
    %c0_74 = arith.constant 0 : index
    %383 = vector.load %arg9[%c0_73, %c0_74] : memref<2x1xf32, #tpu.memory_space<vmem>>, vector<2x1xf32>
    %384 = vector.broadcast %383 : vector<2x1xf32> to vector<2x64xf32>
    %385 = arith.mulf %382, %384 : vector<2x64xf32>
    %c0_75 = arith.constant 0 : index
    %c0_76 = arith.constant 0 : index
    %386 = vector.load %arg10[%c0_75, %c0_76] : memref<2x1xf32, #tpu.memory_space<vmem>>, vector<2x1xf32>
    %387 = vector.broadcast %386 : vector<2x1xf32> to vector<2x64xf32>
    %388 = arith.addf %385, %387 : vector<2x64xf32>
    %cst_77 = arith.constant 0.000000e+00 : f32
    %389 = vector.broadcast %cst_77 : f32 to vector<2x64xf32>
    %390 = arith.maximumf %388, %389 : vector<2x64xf32>
    %391 = vector.extract_strided_slice %390 {offsets = [0, 0], sizes = [2, 32], strides = [1, 1]} : vector<2x64xf32> to vector<2x32xf32>
    %392 = vector.extract_strided_slice %390 {offsets = [0, 32], sizes = [2, 32], strides = [1, 1]} : vector<2x64xf32> to vector<2x32xf32>
    %393 = vector.extract_strided_slice %391 {offsets = [0, 0], sizes = [2, 1], strides = [1, 1]} : vector<2x32xf32> to vector<2x1xf32>
    %394 = vector.extract_strided_slice %391 {offsets = [0, 0], sizes = [2, 31], strides = [1, 1]} : vector<2x32xf32> to vector<2x31xf32>
    %395 = tpu.concatenate %393, %394 in 1 : vector<2x1xf32>, vector<2x31xf32> -> vector<2x32xf32>
    %396 = vector.broadcast %13 : vector<1x32xf32> to vector<2x32xf32>
    %397 = arith.mulf %396, %395 : vector<2x32xf32>
    %398 = vector.extract_strided_slice %391 {offsets = [0, 1], sizes = [2, 31], strides = [1, 1]} : vector<2x32xf32> to vector<2x31xf32>
    %399 = vector.extract_strided_slice %391 {offsets = [0, 31], sizes = [2, 1], strides = [1, 1]} : vector<2x32xf32> to vector<2x1xf32>
    %400 = tpu.concatenate %398, %399 in 1 : vector<2x31xf32>, vector<2x1xf32> -> vector<2x32xf32>
    %401 = vector.broadcast %16 : vector<1x32xf32> to vector<2x32xf32>
    %402 = arith.mulf %401, %400 : vector<2x32xf32>
    %403 = vector.extract_strided_slice %392 {offsets = [0, 0], sizes = [2, 1], strides = [1, 1]} : vector<2x32xf32> to vector<2x1xf32>
    %404 = vector.extract_strided_slice %392 {offsets = [0, 0], sizes = [2, 31], strides = [1, 1]} : vector<2x32xf32> to vector<2x31xf32>
    %405 = tpu.concatenate %403, %404 in 1 : vector<2x1xf32>, vector<2x31xf32> -> vector<2x32xf32>
    %406 = vector.broadcast %13 : vector<1x32xf32> to vector<2x32xf32>
    %407 = arith.mulf %406, %405 : vector<2x32xf32>
    %408 = vector.extract_strided_slice %392 {offsets = [0, 1], sizes = [2, 31], strides = [1, 1]} : vector<2x32xf32> to vector<2x31xf32>
    %409 = vector.extract_strided_slice %392 {offsets = [0, 31], sizes = [2, 1], strides = [1, 1]} : vector<2x32xf32> to vector<2x1xf32>
    %410 = tpu.concatenate %408, %409 in 1 : vector<2x31xf32>, vector<2x1xf32> -> vector<2x32xf32>
    %411 = vector.broadcast %16 : vector<1x32xf32> to vector<2x32xf32>
    %412 = arith.mulf %411, %410 : vector<2x32xf32>
    %cst_78 = arith.constant 0.000000e+00 : f32
    %413 = vector.broadcast %cst_78 : f32 to vector<2x32xf32>
    %414 = tpu.concatenate %413, %413, %413, %397, %391, %402, %407, %392, %412 in 0 : vector<2x32xf32>, vector<2x32xf32>, vector<2x32xf32>, vector<2x32xf32>, vector<2x32xf32>, vector<2x32xf32>, vector<2x32xf32>, vector<2x32xf32>, vector<2x32xf32> -> vector<18x32xf32>
    %c0_79 = arith.constant 0 : index
    %c0_80 = arith.constant 0 : index
    %415 = vector.load %arg11[%c0_79, %c0_80] : memref<8x18xf32, #tpu.memory_space<vmem>>, vector<8x18xf32>
    %cst_81 = arith.constant dense<0.000000e+00> : vector<8x32xf32>
    %416 = tpu.matmul %415, %414, %cst_81 {dimension_numbers = #tpu.dot_dimension_numbers<[1], [0], [0], [1], [0, 0, 1, 1], [], []>} : vector<8x18xf32>, vector<18x32xf32>, vector<8x32xf32> -> vector<8x32xf32>
    %c0_82 = arith.constant 0 : index
    %c0_83 = arith.constant 0 : index
    %417 = vector.load %arg12[%c0_82, %c0_83] : memref<8x1xf32, #tpu.memory_space<vmem>>, vector<8x1xf32>
    %418 = vector.broadcast %417 : vector<8x1xf32> to vector<8x32xf32>
    %419 = arith.mulf %416, %418 : vector<8x32xf32>
    %c0_84 = arith.constant 0 : index
    %c0_85 = arith.constant 0 : index
    %420 = vector.load %arg13[%c0_84, %c0_85] : memref<8x1xf32, #tpu.memory_space<vmem>>, vector<8x1xf32>
    %421 = vector.broadcast %420 : vector<8x1xf32> to vector<8x32xf32>
    %422 = arith.addf %419, %421 : vector<8x32xf32>
    %cst_86 = arith.constant 0.000000e+00 : f32
    %423 = vector.broadcast %cst_86 : f32 to vector<8x32xf32>
    %424 = arith.maximumf %422, %423 : vector<8x32xf32>
    %c0_87 = arith.constant 0 : index
    %c0_88 = arith.constant 0 : index
    %425 = vector.load %arg14[%c0_87, %c0_88] : memref<32x128xf32, #tpu.memory_space<vmem>>, vector<32x128xf32>
    %cst_89 = arith.constant dense<0.000000e+00> : vector<8x128xf32>
    %426 = tpu.matmul %424, %425, %cst_89 {dimension_numbers = #tpu.dot_dimension_numbers<[1], [0], [0], [1], [0, 0, 1, 1], [], []>} : vector<8x32xf32>, vector<32x128xf32>, vector<8x128xf32> -> vector<8x128xf32>
    %c0_90 = arith.constant 0 : index
    %c0_91 = arith.constant 0 : index
    %c0_92 = arith.constant 0 : index
    %427 = vector.load %arg15[%c0_90, %c0_91, %c0_92] : memref<1x8x128xf32, #tpu.memory_space<vmem>>, vector<1x8x128xf32>
    %428 = vector.shape_cast %427 : vector<1x8x128xf32> to vector<8x128xf32>
    %429 = vector.shape_cast %426 : vector<8x128xf32> to vector<1x8x128xf32>
    tpu.vector_store %arg15[%c0_90, %c0_91, %c0_92], %429 {strides = array<i32>} : memref<1x8x128xf32, #tpu.memory_space<vmem>>, vector<1x8x128xf32>,
    return
  }
  func.func @transform_0(%arg0: i32) -> (i32, i32, i32, i32) {
    %c0_i32 = arith.constant 0 : i32
    %c0_i32_0 = arith.constant 0 : i32
    %c0_i32_1 = arith.constant 0 : i32
    %c0_i32_2 = arith.constant 0 : i32
    return %arg0, %c0_i32, %c0_i32_0, %c0_i32_1 : i32, i32, i32, i32
  }
  func.func @transform_1(%arg0: i32) -> (i32, i32) {
    %c0_i32 = arith.constant 0 : i32
    %c0_i32_0 = arith.constant 0 : i32
    %c0_i32_1 = arith.constant 0 : i32
    return %c0_i32, %c0_i32_0 : i32, i32
  }
  func.func @transform_2(%arg0: i32) -> (i32, i32) {
    %c0_i32 = arith.constant 0 : i32
    %c0_i32_0 = arith.constant 0 : i32
    %c0_i32_1 = arith.constant 0 : i32
    return %c0_i32, %c0_i32_0 : i32, i32
  }
  func.func @transform_3(%arg0: i32) -> (i32, i32) {
    %c0_i32 = arith.constant 0 : i32
    %c0_i32_0 = arith.constant 0 : i32
    %c0_i32_1 = arith.constant 0 : i32
    return %c0_i32, %c0_i32_0 : i32, i32
  }
  func.func @transform_4(%arg0: i32) -> (i32, i32) {
    %c0_i32 = arith.constant 0 : i32
    %c0_i32_0 = arith.constant 0 : i32
    %c0_i32_1 = arith.constant 0 : i32
    return %c0_i32, %c0_i32_0 : i32, i32
  }
  func.func @transform_5(%arg0: i32) -> (i32, i32) {
    %c0_i32 = arith.constant 0 : i32
    %c0_i32_0 = arith.constant 0 : i32
    %c0_i32_1 = arith.constant 0 : i32
    return %c0_i32, %c0_i32_0 : i32, i32
  }
  func.func @transform_6(%arg0: i32) -> (i32, i32) {
    %c0_i32 = arith.constant 0 : i32
    %c0_i32_0 = arith.constant 0 : i32
    %c0_i32_1 = arith.constant 0 : i32
    return %c0_i32, %c0_i32_0 : i32, i32
  }
  func.func @transform_7(%arg0: i32) -> (i32, i32) {
    %c0_i32 = arith.constant 0 : i32
    %c0_i32_0 = arith.constant 0 : i32
    %c0_i32_1 = arith.constant 0 : i32
    return %c0_i32, %c0_i32_0 : i32, i32
  }
  func.func @transform_8(%arg0: i32) -> (i32, i32) {
    %c0_i32 = arith.constant 0 : i32
    %c0_i32_0 = arith.constant 0 : i32
    %c0_i32_1 = arith.constant 0 : i32
    return %c0_i32, %c0_i32_0 : i32, i32
  }
  func.func @transform_9(%arg0: i32) -> (i32, i32) {
    %c0_i32 = arith.constant 0 : i32
    %c0_i32_0 = arith.constant 0 : i32
    %c0_i32_1 = arith.constant 0 : i32
    return %c0_i32, %c0_i32_0 : i32, i32
  }
  func.func @transform_10(%arg0: i32) -> (i32, i32) {
    %c0_i32 = arith.constant 0 : i32
    %c0_i32_0 = arith.constant 0 : i32
    %c0_i32_1 = arith.constant 0 : i32
    return %c0_i32, %c0_i32_0 : i32, i32
  }
  func.func @transform_11(%arg0: i32) -> (i32, i32) {
    %c0_i32 = arith.constant 0 : i32
    %c0_i32_0 = arith.constant 0 : i32
    %c0_i32_1 = arith.constant 0 : i32
    return %c0_i32, %c0_i32_0 : i32, i32
  }
  func.func @transform_12(%arg0: i32) -> (i32, i32) {
    %c0_i32 = arith.constant 0 : i32
    %c0_i32_0 = arith.constant 0 : i32
    %c0_i32_1 = arith.constant 0 : i32
    return %c0_i32, %c0_i32_0 : i32, i32
  }
  func.func @transform_13(%arg0: i32) -> (i32, i32) {
    %c0_i32 = arith.constant 0 : i32
    %c0_i32_0 = arith.constant 0 : i32
    %c0_i32_1 = arith.constant 0 : i32
    return %c0_i32, %c0_i32_0 : i32, i32
  }
  func.func @transform_14(%arg0: i32) -> (i32, i32, i32) {
    %c0_i32 = arith.constant 0 : i32
    %c0_i32_0 = arith.constant 0 : i32
    %c0_i32_1 = arith.constant 0 : i32
    return %arg0, %c0_i32, %c0_i32_0 : i32, i32, i32
  }
}

</mosaic_0001>

<llo_original>
// kernel: tpu_custom_call.1
$region0: #{tpu_custom_call.1}
  #allocation0 [shape = 'u32[]', space=smem, size = 0x4, offset = 0x4, fixed_abs, tag = 'smem constant byte address 0x4 - core index']
  #allocation1 [shape = 'u32[144,128]{1,0:T(1,128)}', space=vmem, size = 0x12000, scoped, tag = 'internal scratch']
  %s0 = inlined_call_operand.hbm [shape: f32[1,8,16,32], index: 0, kind: input, shape index: {}]
  %s1 = inlined_call_operand.vmem [shape: f32[4,72], index: 1, kind: input, shape index: {}]
  %s2 = inlined_call_operand.vmem [shape: f32[4,1], index: 2, kind: input, shape index: {}]
  %s3 = inlined_call_operand.vmem [shape: f32[4,1], index: 3, kind: input, shape index: {}]
  %s4 = inlined_call_operand.vmem [shape: f32[4,36], index: 4, kind: input, shape index: {}]
  %s5 = inlined_call_operand.vmem [shape: f32[4,1], index: 5, kind: input, shape index: {}]
  %s6 = inlined_call_operand.vmem [shape: f32[4,1], index: 6, kind: input, shape index: {}]
  %s7 = inlined_call_operand.vmem [shape: f32[2,36], index: 7, kind: input, shape index: {}]
  %s8 = inlined_call_operand.vmem [shape: f32[2,1], index: 8, kind: input, shape index: {}]
  %s9 = inlined_call_operand.vmem [shape: f32[2,1], index: 9, kind: input, shape index: {}]
  %s10 = inlined_call_operand.vmem [shape: f32[8,18], index: 10, kind: input, shape index: {}]
  %s11 = inlined_call_operand.vmem [shape: f32[8,1], index: 11, kind: input, shape index: {}]
  %s12 = inlined_call_operand.vmem [shape: f32[8,1], index: 12, kind: input, shape index: {}]
  %s13 = inlined_call_operand.vmem [shape: f32[32,128], index: 13, kind: input, shape index: {}]
  %s14 = inlined_call_operand.hbm [shape: f32[1,8,128], index: 14, kind: output, shape index: {}]
  %s15 = sld [smem:[#allocation0]]
  $region70: #{tpu_custom_call.1} parent=0
    _
  %s17 = ssub.s32 1, %s15
  %s18 = scalar_select 0, %s17, %s15
  $region1: #{tpu_custom_call.1} parent=0
    #allocation2 [shape = 'u8[65536]{0}', space=vmem, size = 0x10000, scoped, tag = 'input window, operand 0, single buffered']
    #allocation3 [shape = 's32[1]{0}', space=sflag, size = 0x4, scoped, tag = 'scoped memory for tpu_custom_call.1']
    #allocation4 [shape = 's32[1]{0}', space=sflag, size = 0x4, scoped, tag = 'scoped memory for tpu_custom_call.1']
    #allocation5 [shape = 'u8[4096]{0}', space=vmem, size = 0x1000, scoped, tag = 'output window, operand 0, single buffered']
    %19 = vsyncpa [#allocation3], 0
    %20 = vsyncpa [#allocation4], 0
    // Predicated region
    $region2: #{tpu_custom_call.1} parent=1 // pred_check
      _
    $region3: #{tpu_custom_call.1} parent=1 // pred_check_branch
      %22 = sbr.rel (0) target = $region5
    $region4: #{tpu_custom_call.1} parent=1 // pred_region
      %s24 = ssub.s32 2048, 2048
      %25 = vsyncadd [#allocation3], %s24
      %s26 = sshll.u32 [#allocation2], 4
      %s27 = int_to_ptr.vmem [resolvable:$true] %s26
      %32 = dma.hbm_to_vmem [thread:$0]  %s0, 2048, %s27, [#allocation3], 128, 128, 8
    $region5: #{tpu_custom_call.1} parent=1 // pred_fallthru
      _
    // Predicated region
    $region6: #{tpu_custom_call.1} parent=1 // pred_check
      _
    $region7: #{tpu_custom_call.1} parent=1 // pred_check_branch
      %34 = sbr.rel (0) target = $region9
    $region8: #{tpu_custom_call.1} parent=1 // pred_region
      _
    $region9: #{tpu_custom_call.1} parent=1 // pred_fallthru
      _
    // Predicated region
    $region10: #{tpu_custom_call.1} parent=1 // pred_check
      _
    $region11: #{tpu_custom_call.1} parent=1 // pred_check_branch
      %36 = sbr.rel (0) target = $region13
    $region12: #{tpu_custom_call.1} parent=1 // pred_region
      _
    $region13: #{tpu_custom_call.1} parent=1 // pred_fallthru
      _
    // Predicated region
    $region14: #{tpu_custom_call.1} parent=1 // pred_check
      _
    $region15: #{tpu_custom_call.1} parent=1 // pred_check_branch
      %38 = sbr.rel (0) target = $region17
    $region16: #{tpu_custom_call.1} parent=1 // pred_region
      _
    $region17: #{tpu_custom_call.1} parent=1 // pred_fallthru
      _
    // Predicated region
    $region18: #{tpu_custom_call.1} parent=1 // pred_check
      _
    $region19: #{tpu_custom_call.1} parent=1 // pred_check_branch
      %40 = sbr.rel (0) target = $region21
    $region20: #{tpu_custom_call.1} parent=1 // pred_region
      _
    $region21: #{tpu_custom_call.1} parent=1 // pred_fallthru
      _
    // Predicated region
    $region22: #{tpu_custom_call.1} parent=1 // pred_check
      _
    $region23: #{tpu_custom_call.1} parent=1 // pred_check_branch
      %42 = sbr.rel (0) target = $region25
    $region24: #{tpu_custom_call.1} parent=1 // pred_region
      _
    $region25: #{tpu_custom_call.1} parent=1 // pred_fallthru
      _
    // Predicated region
    $region26: #{tpu_custom_call.1} parent=1 // pred_check
      _
    $region27: #{tpu_custom_call.1} parent=1 // pred_check_branch
      %44 = sbr.rel (0) target = $region29
    $region28: #{tpu_custom_call.1} parent=1 // pred_region
      _
    $region29: #{tpu_custom_call.1} parent=1 // pred_fallthru
      _
    // Predicated region
    $region30: #{tpu_custom_call.1} parent=1 // pred_check
      _
    $region31: #{tpu_custom_call.1} parent=1 // pred_check_branch
      %46 = sbr.rel (0) target = $region33
    $region32: #{tpu_custom_call.1} parent=1 // pred_region
      _
    $region33: #{tpu_custom_call.1} parent=1 // pred_fallthru
      _
    // Predicated region
    $region34: #{tpu_custom_call.1} parent=1 // pred_check
      _
    $region35: #{tpu_custom_call.1} parent=1 // pred_check_branch
      %48 = sbr.rel (0) target = $region37
    $region36: #{tpu_custom_call.1} parent=1 // pred_region
      _
    $region37: #{tpu_custom_call.1} parent=1 // pred_fallthru
      _
    // Predicated region
    $region38: #{tpu_custom_call.1} parent=1 // pred_check
      _
    $region39: #{tpu_custom_call.1} parent=1 // pred_check_branch
      %50 = sbr.rel (0) target = $region41
    $region40: #{tpu_custom_call.1} parent=1 // pred_region
      _
    $region41: #{tpu_custom_call.1} parent=1 // pred_fallthru
      _
    // Predicated region
    $region42: #{tpu_custom_call.1} parent=1 // pred_check
      _
    $region43: #{tpu_custom_call.1} parent=1 // pred_check_branch
      %52 = sbr.rel (0) target = $region45
    $region44: #{tpu_custom_call.1} parent=1 // pred_region
      _
    $region45: #{tpu_custom_call.1} parent=1 // pred_fallthru
      _
    // Predicated region
    $region46: #{tpu_custom_call.1} parent=1 // pred_check
      _
    $region47: #{tpu_custom_call.1} parent=1 // pred_check_branch
      %54 = sbr.rel (0) target = $region49
    $region48: #{tpu_custom_call.1} parent=1 // pred_region
      _
    $region49: #{tpu_custom_call.1} parent=1 // pred_fallthru
      _
    // Predicated region
    $region50: #{tpu_custom_call.1} parent=1 // pred_check
      _
    $region51: #{tpu_custom_call.1} parent=1 // pred_check_branch
      %56 = sbr.rel (0) target = $region53
    $region52: #{tpu_custom_call.1} parent=1 // pred_region
      _
    $region53: #{tpu_custom_call.1} parent=1 // pred_fallthru
      _
    // Predicated region
    $region54: #{tpu_custom_call.1} parent=1 // pred_check
      _
    $region55: #{tpu_custom_call.1} parent=1 // pred_check_branch
      %58 = sbr.rel (0) target = $region57
    $region56: #{tpu_custom_call.1} parent=1 // pred_region
      _
    $region57: #{tpu_custom_call.1} parent=1 // pred_fallthru
      _
    // Predicated region
    $region58: #{tpu_custom_call.1} parent=1 // pred_check
      _
    $region59: #{tpu_custom_call.1} parent=1 // pred_check_branch
      %60 = sbr.rel (0) target = $region61
    $region60: #{tpu_custom_call.1} parent=1 // pred_region
      %61 = dma.done [#allocation3], 2048
    $region61: #{tpu_custom_call.1} parent=1 // pred_fallthru
      _
    %v62 = vlaneseq
    %v63 = vand.u32 %v62, 127
    %vm64 = vcmp.eq.s32.totalorder %v63, 0
    %vm65 = vcmp.eq.s32.totalorder %v63, 15
    %vm66 = vcmp.eq.s32.totalorder %v63, 16
    %vm67 = vmor %vm64, %vm66
    %vm68 = vcmp.eq.s32.totalorder %v63, 31
    %vm69 = vmor %vm65, %vm68
    %v70 = vsel %vm67, 0.0, 1.0
    %v71 = vsel %vm69, 0.0, 1.0
    %v72 = vld [vmem:[#allocation2] sm:$0x1]
    %v73 = vld [vmem:[#allocation2 + $0x10] sm:$0x1]
    %v74 = vld [vmem:[#allocation2 + $0x20] sm:$0x1]
    %v75 = vld [vmem:[#allocation2 + $0x30] sm:$0x1]
    %v76 = vld [vmem:[#allocation2 + $0x40] sm:$0x1]
    %v77 = vld [vmem:[#allocation2 + $0x50] sm:$0x1]
    %v78 = vld [vmem:[#allocation2 + $0x60] sm:$0x1]
    %v79 = vld [vmem:[#allocation2 + $0x70] sm:$0x1]
    %v80 = vld [vmem:[#allocation2 + $0x1] sm:$0x1]
    %v81 = vld [vmem:[#allocation2 + $0x11] sm:$0x1]
    %v82 = vld [vmem:[#allocation2 + $0x21] sm:$0x1]
    %v83 = vld [vmem:[#allocation2 + $0x31] sm:$0x1]
    %v84 = vld [vmem:[#allocation2 + $0x41] sm:$0x1]
    %v85 = vld [vmem:[#allocation2 + $0x51] sm:$0x1]
    %v86 = vld [vmem:[#allocation2 + $0x61] sm:$0x1]
    %v87 = vld [vmem:[#allocation2 + $0x71] sm:$0x1]
    %v88 = vld [vmem:[#allocation2 + $0x2] sm:$0x1]
    %v89 = vld [vmem:[#allocation2 + $0x12] sm:$0x1]
    %v90 = vld [vmem:[#allocation2 + $0x22] sm:$0x1]
    %v91 = vld [vmem:[#allocation2 + $0x32] sm:$0x1]
    %v92 = vld [vmem:[#allocation2 + $0x42] sm:$0x1]
    %v93 = vld [vmem:[#allocation2 + $0x52] sm:$0x1]
    %v94 = vld [vmem:[#allocation2 + $0x62] sm:$0x1]
    %v95 = vld [vmem:[#allocation2 + $0x72] sm:$0x1]
    %v96 = vld [vmem:[#allocation2 + $0x3] sm:$0x1]
    %v97 = vld [vmem:[#allocation2 + $0x13] sm:$0x1]
    %v98 = vld [vmem:[#allocation2 + $0x23] sm:$0x1]
    %v99 = vld [vmem:[#allocation2 + $0x33] sm:$0x1]
    %v100 = vld [vmem:[#allocation2 + $0x43] sm:$0x1]
    %v101 = vld [vmem:[#allocation2 + $0x53] sm:$0x1]
    %v102 = vld [vmem:[#allocation2 + $0x63] sm:$0x1]
    %v103 = vld [vmem:[#allocation2 + $0x73] sm:$0x1]
    %v104 = vld [vmem:[#allocation2 + $0x4] sm:$0x1]
    %v105 = vld [vmem:[#allocation2 + $0x14] sm:$0x1]
    %v106 = vld [vmem:[#allocation2 + $0x24] sm:$0x1]
    %v107 = vld [vmem:[#allocation2 + $0x34] sm:$0x1]
    %v108 = vld [vmem:[#allocation2 + $0x44] sm:$0x1]
    %v109 = vld [vmem:[#allocation2 + $0x54] sm:$0x1]
    %v110 = vld [vmem:[#allocation2 + $0x64] sm:$0x1]
    %v111 = vld [vmem:[#allocation2 + $0x74] sm:$0x1]
    %v112 = vld [vmem:[#allocation2 + $0x5] sm:$0x1]
    %v113 = vld [vmem:[#allocation2 + $0x15] sm:$0x1]
    %v114 = vld [vmem:[#allocation2 + $0x25] sm:$0x1]
    %v115 = vld [vmem:[#allocation2 + $0x35] sm:$0x1]
    %v116 = vld [vmem:[#allocation2 + $0x45] sm:$0x1]
    %v117 = vld [vmem:[#allocation2 + $0x55] sm:$0x1]
    %v118 = vld [vmem:[#allocation2 + $0x65] sm:$0x1]
    %v119 = vld [vmem:[#allocation2 + $0x75] sm:$0x1]
    %v120 = vld [vmem:[#allocation2 + $0x6] sm:$0x1]
    %v121 = vld [vmem:[#allocation2 + $0x16] sm:$0x1]
    %v122 = vld [vmem:[#allocation2 + $0x26] sm:$0x1]
    %v123 = vld [vmem:[#allocation2 + $0x36] sm:$0x1]
    %v124 = vld [vmem:[#allocation2 + $0x46] sm:$0x1]
    %v125 = vld [vmem:[#allocation2 + $0x56] sm:$0x1]
    %v126 = vld [vmem:[#allocation2 + $0x66] sm:$0x1]
    %v127 = vld [vmem:[#allocation2 + $0x76] sm:$0x1]
    %v128 = vld [vmem:[#allocation2 + $0x7] sm:$0x1]
    %v129 = vld [vmem:[#allocation2 + $0x17] sm:$0x1]
    %v130 = vld [vmem:[#allocation2 + $0x27] sm:$0x1]
    %v131 = vld [vmem:[#allocation2 + $0x37] sm:$0x1]
    %v132 = vld [vmem:[#allocation2 + $0x47] sm:$0x1]
    %v133 = vld [vmem:[#allocation2 + $0x57] sm:$0x1]
    %v134 = vld [vmem:[#allocation2 + $0x67] sm:$0x1]
    %v135 = vld [vmem:[#allocation2 + $0x77] sm:$0x1]
    %v136 = vld [vmem:[#allocation2 + $0x8] sm:$0x1]
    %v137 = vld [vmem:[#allocation2 + $0x18] sm:$0x1]
    %v138 = vld [vmem:[#allocation2 + $0x28] sm:$0x1]
    %v139 = vld [vmem:[#allocation2 + $0x38] sm:$0x1]
    %v140 = vld [vmem:[#allocation2 + $0x48] sm:$0x1]
    %v141 = vld [vmem:[#allocation2 + $0x58] sm:$0x1]
    %v142 = vld [vmem:[#allocation2 + $0x68] sm:$0x1]
    %v143 = vld [vmem:[#allocation2 + $0x78] sm:$0x1]
    %v144 = vld [vmem:[#allocation2 + $0x9] sm:$0x1]
    %v145 = vld [vmem:[#allocation2 + $0x19] sm:$0x1]
    %v146 = vld [vmem:[#allocation2 + $0x29] sm:$0x1]
    %v147 = vld [vmem:[#allocation2 + $0x39] sm:$0x1]
    %v148 = vld [vmem:[#allocation2 + $0x49] sm:$0x1]
    %v149 = vld [vmem:[#allocation2 + $0x59] sm:$0x1]
    %v150 = vld [vmem:[#allocation2 + $0x69] sm:$0x1]
    %v151 = vld [vmem:[#allocation2 + $0x79] sm:$0x1]
    %v152 = vld [vmem:[#allocation2 + $0xa] sm:$0x1]
    %v153 = vld [vmem:[#allocation2 + $0x1a] sm:$0x1]
    %v154 = vld [vmem:[#allocation2 + $0x2a] sm:$0x1]
    %v155 = vld [vmem:[#allocation2 + $0x3a] sm:$0x1]
    %v156 = vld [vmem:[#allocation2 + $0x4a] sm:$0x1]
    %v157 = vld [vmem:[#allocation2 + $0x5a] sm:$0x1]
    %v158 = vld [vmem:[#allocation2 + $0x6a] sm:$0x1]
    %v159 = vld [vmem:[#allocation2 + $0x7a] sm:$0x1]
    %v160 = vld [vmem:[#allocation2 + $0xb] sm:$0x1]
    %v161 = vld [vmem:[#allocation2 + $0x1b] sm:$0x1]
    %v162 = vld [vmem:[#allocation2 + $0x2b] sm:$0x1]
    %v163 = vld [vmem:[#allocation2 + $0x3b] sm:$0x1]
    %v164 = vld [vmem:[#allocation2 + $0x4b] sm:$0x1]
    %v165 = vld [vmem:[#allocation2 + $0x5b] sm:$0x1]
    %v166 = vld [vmem:[#allocation2 + $0x6b] sm:$0x1]
    %v167 = vld [vmem:[#allocation2 + $0x7b] sm:$0x1]
    %v168 = vld [vmem:[#allocation2 + $0xc] sm:$0x1]
    %v169 = vld [vmem:[#allocation2 + $0x1c] sm:$0x1]
    %v170 = vld [vmem:[#allocation2 + $0x2c] sm:$0x1]
    %v171 = vld [vmem:[#allocation2 + $0x3c] sm:$0x1]
    %v172 = vld [vmem:[#allocation2 + $0x4c] sm:$0x1]
    %v173 = vld [vmem:[#allocation2 + $0x5c] sm:$0x1]
    %v174 = vld [vmem:[#allocation2 + $0x6c] sm:$0x1]
    %v175 = vld [vmem:[#allocation2 + $0x7c] sm:$0x1]
    %v176 = vld [vmem:[#allocation2 + $0xd] sm:$0x1]
    %v177 = vld [vmem:[#allocation2 + $0x1d] sm:$0x1]
    %v178 = vld [vmem:[#allocation2 + $0x2d] sm:$0x1]
    %v179 = vld [vmem:[#allocation2 + $0x3d] sm:$0x1]
    %v180 = vld [vmem:[#allocation2 + $0x4d] sm:$0x1]
    %v181 = vld [vmem:[#allocation2 + $0x5d] sm:$0x1]
    %v182 = vld [vmem:[#allocation2 + $0x6d] sm:$0x1]
    %v183 = vld [vmem:[#allocation2 + $0x7d] sm:$0x1]
    %v184 = vld [vmem:[#allocation2 + $0xe] sm:$0x1]
    %v185 = vld [vmem:[#allocation2 + $0x1e] sm:$0x1]
    %v186 = vld [vmem:[#allocation2 + $0x2e] sm:$0x1]
    %v187 = vld [vmem:[#allocation2 + $0x3e] sm:$0x1]
    %v188 = vld [vmem:[#allocation2 + $0x4e] sm:$0x1]
    %v189 = vld [vmem:[#allocation2 + $0x5e] sm:$0x1]
    %v190 = vld [vmem:[#allocation2 + $0x6e] sm:$0x1]
    %v191 = vld [vmem:[#allocation2 + $0x7e] sm:$0x1]
    %v192 = vld [vmem:[#allocation2 + $0xf] sm:$0x1]
    %v193 = vld [vmem:[#allocation2 + $0x1f] sm:$0x1]
    %v194 = vld [vmem:[#allocation2 + $0x2f] sm:$0x1]
    %v195 = vld [vmem:[#allocation2 + $0x3f] sm:$0x1]
    %v196 = vld [vmem:[#allocation2 + $0x4f] sm:$0x1]
    %v197 = vld [vmem:[#allocation2 + $0x5f] sm:$0x1]
    %v198 = vld [vmem:[#allocation2 + $0x6f] sm:$0x1]
    %v199 = vld [vmem:[#allocation2 + $0x7f] sm:$0x1]
    %v208 = vrot.slane %v73, 7
    %vm209 = vcmask 1041409
    %v210 = vsel %vm209, %v208, %v72
    %v211 = vrot.slane %v74, 6
    %vm212 = vcmask 1042434
    %v213 = vsel %vm212, %v211, %v210
    %v214 = vrot.slane %v75, 5
    %vm215 = vcmask 1043459
    %v216 = vsel %vm215, %v214, %v213
    %v217 = vrot.slane %v76, 4
    %vm218 = vcmask 1044484
    %v219 = vsel %vm218, %v217, %v216
    %v220 = vrot.slane %v77, 3
    %vm221 = vcmask 1045509
    %v222 = vsel %vm221, %v220, %v219
    %v223 = vrot.slane %v78, 2
    %vm224 = vcmask 1046534
    %v225 = vsel %vm224, %v223, %v222
    %v226 = vrot.slane %v79, 1
    %vm227 = vcmask 1047559
    %v228 = vsel %vm227, %v226, %v225
    %230 = vrot.lane.b32.xlu0 %v228, 1
    %v231 = vpop.permute.xlu0 %230
    %vm233 = vcmask 7168
    %v234 = vsel %vm233, %v228, %v231
    %v235 = vmul.f32 %v70, %v234
    %236 = vrot.lane.b32.xlu0 %v228, 127
    %v237 = vpop.permute.xlu0 %236
    %vm239 = vcmask 252928
    %v240 = vsel %vm239, %v237, %v228
    %v241 = vmul.f32 %v71, %v240
    %v250 = vrot.slane %v81, 7
    %v251 = vsel %vm209, %v250, %v80
    %v252 = vrot.slane %v82, 6
    %v253 = vsel %vm212, %v252, %v251
    %v254 = vrot.slane %v83, 5
    %v255 = vsel %vm215, %v254, %v253
    %v256 = vrot.slane %v84, 4
    %v257 = vsel %vm218, %v256, %v255
    %v258 = vrot.slane %v85, 3
    %v259 = vsel %vm221, %v258, %v257
    %v260 = vrot.slane %v86, 2
    %v261 = vsel %vm224, %v260, %v259
    %v262 = vrot.slane %v87, 1
    %v263 = vsel %vm227, %v262, %v261
    %265 = vrot.lane.b32.xlu0 %v263, 1
    %v266 = vpop.permute.xlu0 %265
    %v268 = vsel %vm233, %v263, %v266
    %v269 = vmul.f32 %v70, %v268
    %270 = vrot.lane.b32.xlu0 %v263, 127
    %v271 = vpop.permute.xlu0 %270
    %v273 = vsel %vm239, %v271, %v263
    %v274 = vmul.f32 %v71, %v273
    %v283 = vrot.slane %v89, 7
    %v284 = vsel %vm209, %v283, %v88
    %v285 = vrot.slane %v90, 6
    %v286 = vsel %vm212, %v285, %v284
    %v287 = vrot.slane %v91, 5
    %v288 = vsel %vm215, %v287, %v286
    %v289 = vrot.slane %v92, 4
    %v290 = vsel %vm218, %v289, %v288
    %v291 = vrot.slane %v93, 3
    %v292 = vsel %vm221, %v291, %v290
    %v293 = vrot.slane %v94, 2
    %v294 = vsel %vm224, %v293, %v292
    %v295 = vrot.slane %v95, 1
    %v296 = vsel %vm227, %v295, %v294
    %298 = vrot.lane.b32.xlu0 %v296, 1
    %v299 = vpop.permute.xlu0 %298
    %v301 = vsel %vm233, %v296, %v299
    %v302 = vmul.f32 %v70, %v301
    %303 = vrot.lane.b32.xlu0 %v296, 127
    %v304 = vpop.permute.xlu0 %303
    %v306 = vsel %vm239, %v304, %v296
    %v307 = vmul.f32 %v71, %v306
    %v316 = vrot.slane %v97, 7
    %v317 = vsel %vm209, %v316, %v96
    %v318 = vrot.slane %v98, 6
    %v319 = vsel %vm212, %v318, %v317
    %v320 = vrot.slane %v99, 5
    %v321 = vsel %vm215, %v320, %v319
    %v322 = vrot.slane %v100, 4
    %v323 = vsel %vm218, %v322, %v321
    %v324 = vrot.slane %v101, 3
    %v325 = vsel %vm221, %v324, %v323
    %v326 = vrot.slane %v102, 2
    %v327 = vsel %vm224, %v326, %v325
    %v328 = vrot.slane %v103, 1
    %v329 = vsel %vm227, %v328, %v327
    %331 = vrot.lane.b32.xlu0 %v329, 1
    %v332 = vpop.permute.xlu0 %331
    %v334 = vsel %vm233, %v329, %v332
    %v335 = vmul.f32 %v70, %v334
    %336 = vrot.lane.b32.xlu0 %v329, 127
    %v337 = vpop.permute.xlu0 %336
    %v339 = vsel %vm239, %v337, %v329
    %v340 = vmul.f32 %v71, %v339
    %v349 = vrot.slane %v105, 7
    %v350 = vsel %vm209, %v349, %v104
    %v351 = vrot.slane %v106, 6
    %v352 = vsel %vm212, %v351, %v350
    %v353 = vrot.slane %v107, 5
    %v354 = vsel %vm215, %v353, %v352
    %v355 = vrot.slane %v108, 4
    %v356 = vsel %vm218, %v355, %v354
    %v357 = vrot.slane %v109, 3
    %v358 = vsel %vm221, %v357, %v356
    %v359 = vrot.slane %v110, 2
    %v360 = vsel %vm224, %v359, %v358
    %v361 = vrot.slane %v111, 1
    %v362 = vsel %vm227, %v361, %v360
    %364 = vrot.lane.b32.xlu0 %v362, 1
    %v365 = vpop.permute.xlu0 %364
    %v367 = vsel %vm233, %v362, %v365
    %v368 = vmul.f32 %v70, %v367
    %369 = vrot.lane.b32.xlu0 %v362, 127
    %v370 = vpop.permute.xlu0 %369
    %v372 = vsel %vm239, %v370, %v362
    %v373 = vmul.f32 %v71, %v372
    %v382 = vrot.slane %v113, 7
    %v383 = vsel %vm209, %v382, %v112
    %v384 = vrot.slane %v114, 6
    %v385 = vsel %vm212, %v384, %v383
    %v386 = vrot.slane %v115, 5
    %v387 = vsel %vm215, %v386, %v385
    %v388 = vrot.slane %v116, 4
    %v389 = vsel %vm218, %v388, %v387
    %v390 = vrot.slane %v117, 3
    %v391 = vsel %vm221, %v390, %v389
    %v392 = vrot.slane %v118, 2
    %v393 = vsel %vm224, %v392, %v391
    %v394 = vrot.slane %v119, 1
    %v395 = vsel %vm227, %v394, %v393
    %397 = vrot.lane.b32.xlu0 %v395, 1
    %v398 = vpop.permute.xlu0 %397
    %v400 = vsel %vm233, %v395, %v398
    %v401 = vmul.f32 %v70, %v400
    %402 = vrot.lane.b32.xlu0 %v395, 127
    %v403 = vpop.permute.xlu0 %402
    %v405 = vsel %vm239, %v403, %v395
    %v406 = vmul.f32 %v71, %v405
    %v415 = vrot.slane %v121, 7
    %v416 = vsel %vm209, %v415, %v120
    %v417 = vrot.slane %v122, 6
    %v418 = vsel %vm212, %v417, %v416
    %v419 = vrot.slane %v123, 5
    %v420 = vsel %vm215, %v419, %v418
    %v421 = vrot.slane %v124, 4
    %v422 = vsel %vm218, %v421, %v420
    %v423 = vrot.slane %v125, 3
    %v424 = vsel %vm221, %v423, %v422
    %v425 = vrot.slane %v126, 2
    %v426 = vsel %vm224, %v425, %v424
    %v427 = vrot.slane %v127, 1
    %v428 = vsel %vm227, %v427, %v426
    %430 = vrot.lane.b32.xlu0 %v428, 1
    %v431 = vpop.permute.xlu0 %430
    %v433 = vsel %vm233, %v428, %v431
    %v434 = vmul.f32 %v70, %v433
    %435 = vrot.lane.b32.xlu0 %v428, 127
    %v436 = vpop.permute.xlu0 %435
    %v438 = vsel %vm239, %v436, %v428
    %v439 = vmul.f32 %v71, %v438
    %v448 = vrot.slane %v129, 7
    %v449 = vsel %vm209, %v448, %v128
    %v450 = vrot.slane %v130, 6
    %v451 = vsel %vm212, %v450, %v449
    %v452 = vrot.slane %v131, 5
    %v453 = vsel %vm215, %v452, %v451
    %v454 = vrot.slane %v132, 4
    %v455 = vsel %vm218, %v454, %v453
    %v456 = vrot.slane %v133, 3
    %v457 = vsel %vm221, %v456, %v455
    %v458 = vrot.slane %v134, 2
    %v459 = vsel %vm224, %v458, %v457
    %v460 = vrot.slane %v135, 1
    %v461 = vsel %vm227, %v460, %v459
    %463 = vrot.lane.b32.xlu0 %v461, 1
    %v464 = vpop.permute.xlu0 %463
    %v466 = vsel %vm233, %v461, %v464
    %v467 = vmul.f32 %v70, %v466
    %468 = vrot.lane.b32.xlu0 %v461, 127
    %v469 = vpop.permute.xlu0 %468
    %v471 = vsel %vm239, %v469, %v461
    %v472 = vmul.f32 %v71, %v471
    %v481 = vrot.slane %v137, 7
    %v482 = vsel %vm209, %v481, %v136
    %v483 = vrot.slane %v138, 6
    %v484 = vsel %vm212, %v483, %v482
    %v485 = vrot.slane %v139, 5
    %v486 = vsel %vm215, %v485, %v484
    %v487 = vrot.slane %v140, 4
    %v488 = vsel %vm218, %v487, %v486
    %v489 = vrot.slane %v141, 3
    %v490 = vsel %vm221, %v489, %v488
    %v491 = vrot.slane %v142, 2
    %v492 = vsel %vm224, %v491, %v490
    %v493 = vrot.slane %v143, 1
    %v494 = vsel %vm227, %v493, %v492
    %496 = vrot.lane.b32.xlu0 %v494, 1
    %v497 = vpop.permute.xlu0 %496
    %v499 = vsel %vm233, %v494, %v497
    %v500 = vmul.f32 %v70, %v499
    %501 = vrot.lane.b32.xlu0 %v494, 127
    %v502 = vpop.permute.xlu0 %501
    %v504 = vsel %vm239, %v502, %v494
    %v505 = vmul.f32 %v71, %v504
    %v514 = vrot.slane %v145, 7
    %v515 = vsel %vm209, %v514, %v144
    %v516 = vrot.slane %v146, 6
    %v517 = vsel %vm212, %v516, %v515
    %v518 = vrot.slane %v147, 5
    %v519 = vsel %vm215, %v518, %v517
    %v520 = vrot.slane %v148, 4
    %v521 = vsel %vm218, %v520, %v519
    %v522 = vrot.slane %v149, 3
    %v523 = vsel %vm221, %v522, %v521
    %v524 = vrot.slane %v150, 2
    %v525 = vsel %vm224, %v524, %v523
    %v526 = vrot.slane %v151, 1
    %v527 = vsel %vm227, %v526, %v525
    %529 = vrot.lane.b32.xlu0 %v527, 1
    %v530 = vpop.permute.xlu0 %529
    %v532 = vsel %vm233, %v527, %v530
    %v533 = vmul.f32 %v70, %v532
    %534 = vrot.lane.b32.xlu0 %v527, 127
    %v535 = vpop.permute.xlu0 %534
    %v537 = vsel %vm239, %v535, %v527
    %v538 = vmul.f32 %v71, %v537
    %v547 = vrot.slane %v153, 7
    %v548 = vsel %vm209, %v547, %v152
    %v549 = vrot.slane %v154, 6
    %v550 = vsel %vm212, %v549, %v548
    %v551 = vrot.slane %v155, 5
    %v552 = vsel %vm215, %v551, %v550
    %v553 = vrot.slane %v156, 4
    %v554 = vsel %vm218, %v553, %v552
    %v555 = vrot.slane %v157, 3
    %v556 = vsel %vm221, %v555, %v554
    %v557 = vrot.slane %v158, 2
    %v558 = vsel %vm224, %v557, %v556
    %v559 = vrot.slane %v159, 1
    %v560 = vsel %vm227, %v559, %v558
    %562 = vrot.lane.b32.xlu0 %v560, 1
    %v563 = vpop.permute.xlu0 %562
    %v565 = vsel %vm233, %v560, %v563
    %v566 = vmul.f32 %v70, %v565
    %567 = vrot.lane.b32.xlu0 %v560, 127
    %v568 = vpop.permute.xlu0 %567
    %v570 = vsel %vm239, %v568, %v560
    %v571 = vmul.f32 %v71, %v570
    %v580 = vrot.slane %v161, 7
    %v581 = vsel %vm209, %v580, %v160
    %v582 = vrot.slane %v162, 6
    %v583 = vsel %vm212, %v582, %v581
    %v584 = vrot.slane %v163, 5
    %v585 = vsel %vm215, %v584, %v583
    %v586 = vrot.slane %v164, 4
    %v587 = vsel %vm218, %v586, %v585
    %v588 = vrot.slane %v165, 3
    %v589 = vsel %vm221, %v588, %v587
    %v590 = vrot.slane %v166, 2
    %v591 = vsel %vm224, %v590, %v589
    %v592 = vrot.slane %v167, 1
    %v593 = vsel %vm227, %v592, %v591
    %595 = vrot.lane.b32.xlu0 %v593, 1
    %v596 = vpop.permute.xlu0 %595
    %v598 = vsel %vm233, %v593, %v596
    %v599 = vmul.f32 %v70, %v598
    %600 = vrot.lane.b32.xlu0 %v593, 127
    %v601 = vpop.permute.xlu0 %600
    %v603 = vsel %vm239, %v601, %v593
    %v604 = vmul.f32 %v71, %v603
    %v613 = vrot.slane %v169, 7
    %v614 = vsel %vm209, %v613, %v168
    %v615 = vrot.slane %v170, 6
    %v616 = vsel %vm212, %v615, %v614
    %v617 = vrot.slane %v171, 5
    %v618 = vsel %vm215, %v617, %v616
    %v619 = vrot.slane %v172, 4
    %v620 = vsel %vm218, %v619, %v618
    %v621 = vrot.slane %v173, 3
    %v622 = vsel %vm221, %v621, %v620
    %v623 = vrot.slane %v174, 2
    %v624 = vsel %vm224, %v623, %v622
    %v625 = vrot.slane %v175, 1
    %v626 = vsel %vm227, %v625, %v624
    %628 = vrot.lane.b32.xlu0 %v626, 1
    %v629 = vpop.permute.xlu0 %628
    %v631 = vsel %vm233, %v626, %v629
    %v632 = vmul.f32 %v70, %v631
    %633 = vrot.lane.b32.xlu0 %v626, 127
    %v634 = vpop.permute.xlu0 %633
    %v636 = vsel %vm239, %v634, %v626
    %v637 = vmul.f32 %v71, %v636
    %v646 = vrot.slane %v177, 7
    %v647 = vsel %vm209, %v646, %v176
    %v648 = vrot.slane %v178, 6
    %v649 = vsel %vm212, %v648, %v647
    %v650 = vrot.slane %v179, 5
    %v651 = vsel %vm215, %v650, %v649
    %v652 = vrot.slane %v180, 4
    %v653 = vsel %vm218, %v652, %v651
    %v654 = vrot.slane %v181, 3
    %v655 = vsel %vm221, %v654, %v653
    %v656 = vrot.slane %v182, 2
    %v657 = vsel %vm224, %v656, %v655
    %v658 = vrot.slane %v183, 1
    %v659 = vsel %vm227, %v658, %v657
    %661 = vrot.lane.b32.xlu0 %v659, 1
    %v662 = vpop.permute.xlu0 %661
    %v664 = vsel %vm233, %v659, %v662
    %v665 = vmul.f32 %v70, %v664
    %666 = vrot.lane.b32.xlu0 %v659, 127
    %v667 = vpop.permute.xlu0 %666
    %v669 = vsel %vm239, %v667, %v659
    %v670 = vmul.f32 %v71, %v669
    %v679 = vrot.slane %v185, 7
    %v680 = vsel %vm209, %v679, %v184
    %v681 = vrot.slane %v186, 6
    %v682 = vsel %vm212, %v681, %v680
    %v683 = vrot.slane %v187, 5
    %v684 = vsel %vm215, %v683, %v682
    %v685 = vrot.slane %v188, 4
    %v686 = vsel %vm218, %v685, %v684
    %v687 = vrot.slane %v189, 3
    %v688 = vsel %vm221, %v687, %v686
    %v689 = vrot.slane %v190, 2
    %v690 = vsel %vm224, %v689, %v688
    %v691 = vrot.slane %v191, 1
    %v692 = vsel %vm227, %v691, %v690
    %694 = vrot.lane.b32.xlu0 %v692, 1
    %v695 = vpop.permute.xlu0 %694
    %v697 = vsel %vm233, %v692, %v695
    %v698 = vmul.f32 %v70, %v697
    %699 = vrot.lane.b32.xlu0 %v692, 127
    %v700 = vpop.permute.xlu0 %699
    %v702 = vsel %vm239, %v700, %v692
    %v703 = vmul.f32 %v71, %v702
    %v712 = vrot.slane %v193, 7
    %v713 = vsel %vm209, %v712, %v192
    %v714 = vrot.slane %v194, 6
    %v715 = vsel %vm212, %v714, %v713
    %v716 = vrot.slane %v195, 5
    %v717 = vsel %vm215, %v716, %v715
    %v718 = vrot.slane %v196, 4
    %v719 = vsel %vm218, %v718, %v717
    %v720 = vrot.slane %v197, 3
    %v721 = vsel %vm221, %v720, %v719
    %v722 = vrot.slane %v198, 2
    %v723 = vsel %vm224, %v722, %v721
    %v724 = vrot.slane %v199, 1
    %v725 = vsel %vm227, %v724, %v723
    %727 = vrot.lane.b32.xlu0 %v725, 1
    %v728 = vpop.permute.xlu0 %727
    %v730 = vsel %vm233, %v725, %v728
    %v731 = vmul.f32 %v70, %v730
    %732 = vrot.lane.b32.xlu0 %v725, 127
    %v733 = vpop.permute.xlu0 %732
    %v735 = vsel %vm239, %v733, %v725
    %v736 = vmul.f32 %v71, %v735
    %743 = vrot.lane.b32.xlu0 %v269, 32
    %v744 = vpop.permute.xlu0 %743
    %745 = vrot.lane.b32.xlu0 %v263, 32
    %v746 = vpop.permute.xlu0 %745
    %747 = vrot.lane.b32.xlu0 %v274, 32
    %v748 = vpop.permute.xlu0 %747
    %749 = vrot.lane.b32.xlu0 %v302, 32
    %v750 = vpop.permute.xlu0 %749
    %751 = vrot.lane.b32.xlu0 %v296, 32
    %v752 = vpop.permute.xlu0 %751
    %753 = vrot.lane.b32.xlu0 %v307, 32
    %v754 = vpop.permute.xlu0 %753
    %755 = vrot.lane.b32.xlu0 %v335, 32
    %v756 = vpop.permute.xlu0 %755
    %757 = vrot.lane.b32.xlu0 %v329, 32
    %v758 = vpop.permute.xlu0 %757
    %759 = vrot.lane.b32.xlu0 %v340, 32
    %v760 = vpop.permute.xlu0 %759
    %774 = vrot.lane.b32.xlu0 %v335, 64
    %v775 = vpop.permute.xlu0 %774
    %776 = vrot.lane.b32.xlu0 %v329, 64
    %v777 = vpop.permute.xlu0 %776
    %778 = vrot.lane.b32.xlu0 %v340, 64
    %v779 = vpop.permute.xlu0 %778
    %780 = vrot.lane.b32.xlu0 %v368, 64
    %v781 = vpop.permute.xlu0 %780
    %782 = vrot.lane.b32.xlu0 %v362, 64
    %v783 = vpop.permute.xlu0 %782
    %784 = vrot.lane.b32.xlu0 %v373, 64
    %v785 = vpop.permute.xlu0 %784
    %786 = vrot.lane.b32.xlu0 %v401, 64
    %v787 = vpop.permute.xlu0 %786
    %788 = vrot.lane.b32.xlu0 %v395, 64
    %v789 = vpop.permute.xlu0 %788
    %790 = vrot.lane.b32.xlu0 %v406, 64
    %v791 = vpop.permute.xlu0 %790
    %805 = vrot.lane.b32.xlu0 %v401, 96
    %v806 = vpop.permute.xlu0 %805
    %807 = vrot.lane.b32.xlu0 %v395, 96
    %v808 = vpop.permute.xlu0 %807
    %809 = vrot.lane.b32.xlu0 %v406, 96
    %v810 = vpop.permute.xlu0 %809
    %811 = vrot.lane.b32.xlu0 %v434, 96
    %v812 = vpop.permute.xlu0 %811
    %813 = vrot.lane.b32.xlu0 %v428, 96
    %v814 = vpop.permute.xlu0 %813
    %815 = vrot.lane.b32.xlu0 %v439, 96
    %v816 = vpop.permute.xlu0 %815
    %817 = vrot.lane.b32.xlu0 %v467, 96
    %v818 = vpop.permute.xlu0 %817
    %819 = vrot.lane.b32.xlu0 %v461, 96
    %v820 = vpop.permute.xlu0 %819
    %821 = vrot.lane.b32.xlu0 %v472, 96
    %v822 = vpop.permute.xlu0 %821
    %838 = vrot.lane.b32.xlu0 %v533, 32
    %v839 = vpop.permute.xlu0 %838
    %840 = vrot.lane.b32.xlu0 %v527, 32
    %v841 = vpop.permute.xlu0 %840
    %842 = vrot.lane.b32.xlu0 %v538, 32
    %v843 = vpop.permute.xlu0 %842
    %844 = vrot.lane.b32.xlu0 %v566, 32
    %v845 = vpop.permute.xlu0 %844
    %846 = vrot.lane.b32.xlu0 %v560, 32
    %v847 = vpop.permute.xlu0 %846
    %848 = vrot.lane.b32.xlu0 %v571, 32
    %v849 = vpop.permute.xlu0 %848
    %850 = vrot.lane.b32.xlu0 %v599, 32
    %v851 = vpop.permute.xlu0 %850
    %852 = vrot.lane.b32.xlu0 %v593, 32
    %v853 = vpop.permute.xlu0 %852
    %854 = vrot.lane.b32.xlu0 %v604, 32
    %v855 = vpop.permute.xlu0 %854
    %869 = vrot.lane.b32.xlu0 %v599, 64
    %v870 = vpop.permute.xlu0 %869
    %871 = vrot.lane.b32.xlu0 %v593, 64
    %v872 = vpop.permute.xlu0 %871
    %873 = vrot.lane.b32.xlu0 %v604, 64
    %v874 = vpop.permute.xlu0 %873
    %875 = vrot.lane.b32.xlu0 %v632, 64
    %v876 = vpop.permute.xlu0 %875
    %877 = vrot.lane.b32.xlu0 %v626, 64
    %v878 = vpop.permute.xlu0 %877
    %879 = vrot.lane.b32.xlu0 %v637, 64
    %v880 = vpop.permute.xlu0 %879
    %881 = vrot.lane.b32.xlu0 %v665, 64
    %v882 = vpop.permute.xlu0 %881
    %883 = vrot.lane.b32.xlu0 %v659, 64
    %v884 = vpop.permute.xlu0 %883
    %885 = vrot.lane.b32.xlu0 %v670, 64
    %v886 = vpop.permute.xlu0 %885
    %900 = vrot.lane.b32.xlu0 %v665, 96
    %v901 = vpop.permute.xlu0 %900
    %902 = vrot.lane.b32.xlu0 %v659, 96
    %v903 = vpop.permute.xlu0 %902
    %904 = vrot.lane.b32.xlu0 %v670, 96
    %v905 = vpop.permute.xlu0 %904
    %906 = vrot.lane.b32.xlu0 %v698, 96
    %v907 = vpop.permute.xlu0 %906
    %908 = vrot.lane.b32.xlu0 %v692, 96
    %v909 = vpop.permute.xlu0 %908
    %910 = vrot.lane.b32.xlu0 %v703, 96
    %v911 = vpop.permute.xlu0 %910
    %912 = vrot.lane.b32.xlu0 %v731, 96
    %v913 = vpop.permute.xlu0 %912
    %914 = vrot.lane.b32.xlu0 %v725, 96
    %v915 = vpop.permute.xlu0 %914
    %916 = vrot.lane.b32.xlu0 %v736, 96
    %v917 = vpop.permute.xlu0 %916
    %vm927 = vcmask 261120
    %v928 = vsel %vm927, 0.0, %v744
    %v929 = vsel %vm927, 0.0, %v746
    %v930 = vsel %vm927, 0.0, %v748
    %v931 = vsel %vm927, %v235, %v750
    %v932 = vsel %vm927, %v228, %v752
    %v933 = vsel %vm927, %v241, %v754
    %v934 = vsel %vm927, %v269, %v756
    %v935 = vsel %vm927, %v263, %v758
    %v936 = vsel %vm927, %v274, %v760
    %vm937 = vcmask 523264
    %v938 = vsel %vm937, %v928, %v775
    %v939 = vsel %vm937, %v929, %v777
    %v940 = vsel %vm937, %v930, %v779
    %v941 = vsel %vm937, %v931, %v781
    %v942 = vsel %vm937, %v932, %v783
    %v943 = vsel %vm937, %v933, %v785
    %v944 = vsel %vm937, %v934, %v787
    %v945 = vsel %vm937, %v935, %v789
    %v946 = vsel %vm937, %v936, %v791
    %vm947 = vcmask 785408
    %v948 = vsel %vm947, %v938, %v806
    %v949 = vsel %vm947, %v939, %v808
    %v950 = vsel %vm947, %v940, %v810
    %v951 = vsel %vm947, %v941, %v812
    %v952 = vsel %vm947, %v942, %v814
    %v953 = vsel %vm947, %v943, %v816
    %v954 = vsel %vm947, %v944, %v818
    %v955 = vsel %vm947, %v945, %v820
    %v956 = vsel %vm947, %v946, %v822
    %v957 = vsel %vm927, %v467, %v839
    %v958 = vsel %vm927, %v461, %v841
    %v959 = vsel %vm927, %v472, %v843
    %v960 = vsel %vm927, %v500, %v845
    %v961 = vsel %vm927, %v494, %v847
    %v962 = vsel %vm927, %v505, %v849
    %v963 = vsel %vm927, %v533, %v851
    %v964 = vsel %vm927, %v527, %v853
    %v965 = vsel %vm927, %v538, %v855
    %v966 = vsel %vm937, %v957, %v870
    %v967 = vsel %vm937, %v958, %v872
    %v968 = vsel %vm937, %v959, %v874
    %v969 = vsel %vm937, %v960, %v876
    %v970 = vsel %vm937, %v961, %v878
    %v971 = vsel %vm937, %v962, %v880
    %v972 = vsel %vm937, %v963, %v882
    %v973 = vsel %vm937, %v964, %v884
    %v974 = vsel %vm937, %v965, %v886
    %v975 = vsel %vm947, %v966, %v901
    %v976 = vsel %vm947, %v967, %v903
    %v977 = vsel %vm947, %v968, %v905
    %v978 = vsel %vm947, %v969, %v907
    %v979 = vsel %vm947, %v970, %v909
    %v980 = vsel %vm947, %v971, %v911
    %v981 = vsel %vm947, %v972, %v913
    %v982 = vsel %vm947, %v973, %v915
    %v983 = vsel %vm947, %v974, %v917
    %v984 = vld [vmem:[%s1] sm:$0xf]
    %vm985 = vcmask 588800
    %v987 = vsel %vm985, %v984, 0
    %989 = vmatprep.subr.mxu0 %v975
    %990 = vmatpush1.msra.mxu0 %v948
    %991 = vmatprep.subr.mxu0 %v976
    %992 = vmatpush1.msra.mxu0 %v949
    %993 = vmatprep.subr.mxu0 %v977
    %994 = vmatpush1.msra.mxu0 %v950
    %995 = vmatprep.subr.mxu0 %v978
    %996 = vmatpush1.msra.mxu0 %v951
    %997 = vmatprep.subr.mxu0 %v979
    %998 = vmatpush1.msra.mxu0 %v952
    %999 = vmatprep.subr.mxu0 %v980
    %1000 = vmatpush1.msra.mxu0 %v953
    %1001 = vmatprep.subr.mxu0 %v981
    %1002 = vmatpush1.msra.mxu0 %v954
    %1003 = vmatprep.subr.mxu0 %v982
    %1004 = vmatpush1.msra.mxu0 %v955
    %1005 = vmatprep.subr.mxu0 %v983
    %1006 = vmatpush1.msra.mxu0 %v956
    %1007 = vmatprep.subr.mxu0 0.0
    %1008 = vmatpush1.msra.mxu0 0.0
    %1009 = vmatprep.subr.mxu0 0.0
    %1010 = vmatpush1.msra.mxu0 0.0
    %1011 = vmatprep.subr.mxu0 0.0
    %1012 = vmatpush1.msra.mxu0 0.0
    %1013 = vmatprep.subr.mxu0 0.0
    %1014 = vmatpush1.msra.mxu0 0.0
    %1015 = vmatprep.subr.mxu0 0.0
    %1016 = vmatpush1.msra.mxu0 0.0
    %1017 = vmatprep.subr.mxu0 0.0
    %1018 = vmatpush1.msra.mxu0 0.0
    %1019 = vmatprep.subr.mxu0 0.0
    %1020 = vmatpush1.msra.mxu0 0.0
    %1021 = vmatprep.subr.mxu0 0.0
    %1022 = vmatpush1.msra.mxu0 0.0
    %1023 = vmatprep.subr.mxu0 0.0
    %1024 = vmatpush1.msra.mxu0 0.0
    %1025 = vmatprep.subr.mxu0 0.0
    %1026 = vmatpush1.msra.mxu0 0.0
    %1027 = vmatprep.subr.mxu0 0.0
    %1028 = vmatpush1.msra.mxu0 0.0
    %1029 = vmatprep.subr.mxu0 0.0
    %1030 = vmatpush1.msra.mxu0 0.0
    %1031 = vmatprep.subr.mxu0 0.0
    %1032 = vmatpush1.msra.mxu0 0.0
    %1033 = vmatprep.subr.mxu0 0.0
    %1034 = vmatpush1.msra.mxu0 0.0
    %1035 = vmatprep.subr.mxu0 0.0
    %1036 = vmatpush1.msra.mxu0 0.0
    %1037 = vmatprep.subr.mxu0 0.0
    %1038 = vmatpush1.msra.mxu0 0.0
    %1039 = vmatprep.subr.mxu0 0.0
    %1040 = vmatpush1.msra.mxu0 0.0
    %1041 = vmatprep.subr.mxu0 0.0
    %1042 = vmatpush1.msra.mxu0 0.0
    %1043 = vmatprep.subr.mxu0 0.0
    %1044 = vmatpush1.msra.mxu0 0.0
    %1045 = vmatprep.subr.mxu0 0.0
    %1046 = vmatpush1.msra.mxu0 0.0
    %1047 = vmatprep.subr.mxu0 0.0
    %1048 = vmatpush1.msra.mxu0 0.0
    %1049 = vmatprep.subr.mxu0 0.0
    %1050 = vmatpush1.msra.mxu0 0.0
    %1051 = vmatprep.subr.mxu0 0.0
    %1052 = vmatpush1.msra.mxu0 0.0
    %1053 = vmatprep.mubr.f32.mxu0 0.0
    %1054 = vmatmul.mubr.f32.gmra.mrb[0].mxu0 %v987
    %v1055 = vpop.f32.mrb[0].mxu0
    %v1056 = vadd.f32 0.0, %v1055
    %v1057 = vpop.f32.mrb[0].mxu0
    %v1058 = vadd.f32 0.0, %v1057
    %1059 = vdwg.mxu0
    %v1060 = vld [vmem:[%s2] sm:$0xf]
    %1062 = vset.pattern.permute.xlu0 0
    %1063 = vperm.xlu0 %1062, %v1060
    %v1064 = vpop.permute.xlu0 %1063
    %v1066 = vmul.f32 %v1056, %v1064
    %v1067 = vmul.f32 %v1058, %v1064
    %v1068 = vld [vmem:[%s3] sm:$0xf]
    %1070 = vset.pattern.permute.xlu0 0
    %1071 = vperm.xlu0 %1070, %v1068
    %v1072 = vpop.permute.xlu0 %1071
    %v1074 = vadd.f32 %v1066, %v1072
    %v1075 = vadd.f32 %v1067, %v1072
    %v1076 = vmax.f32 %v1074, 0.0
    %v1077 = vmax.f32 %v1075, 0.0
    %1079 = vrot.lane.b32.xlu0 %v1076, 1
    %v1080 = vpop.permute.xlu0 %1079
    %v1082 = vsel %vm233, %v1076, %v1080
    %v1083 = vmul.f32 %v70, %v1082
    %1084 = vrot.lane.b32.xlu0 %v1076, 127
    %v1085 = vpop.permute.xlu0 %1084
    %v1087 = vsel %vm239, %v1085, %v1076
    %v1088 = vmul.f32 %v71, %v1087
    %1089 = vrot.lane.b32.xlu0 %v1076, 96
    %v1090 = vpop.permute.xlu0 %1089
    %1092 = vrot.lane.b32.xlu0 %v1076, 97
    %v1093 = vpop.permute.xlu0 %1092
    %v1095 = vsel %vm233, %v1090, %v1093
    %v1096 = vmul.f32 %v70, %v1095
    %1097 = vrot.lane.b32.xlu0 %v1076, 95
    %v1098 = vpop.permute.xlu0 %1097
    %v1100 = vsel %vm239, %v1098, %v1090
    %v1101 = vmul.f32 %v71, %v1100
    %1102 = vrot.lane.b32.xlu0 %v1076, 64
    %v1103 = vpop.permute.xlu0 %1102
    %1105 = vrot.lane.b32.xlu0 %v1076, 65
    %v1106 = vpop.permute.xlu0 %1105
    %v1108 = vsel %vm233, %v1103, %v1106
    %v1109 = vmul.f32 %v70, %v1108
    %1110 = vrot.lane.b32.xlu0 %v1076, 63
    %v1111 = vpop.permute.xlu0 %1110
    %v1113 = vsel %vm239, %v1111, %v1103
    %v1114 = vmul.f32 %v71, %v1113
    %1115 = vrot.lane.b32.xlu0 %v1076, 32
    %v1116 = vpop.permute.xlu0 %1115
    %1118 = vrot.lane.b32.xlu0 %v1076, 33
    %v1119 = vpop.permute.xlu0 %1118
    %v1121 = vsel %vm233, %v1116, %v1119
    %v1122 = vmul.f32 %v70, %v1121
    %1123 = vrot.lane.b32.xlu0 %v1076, 31
    %v1124 = vpop.permute.xlu0 %1123
    %v1126 = vsel %vm239, %v1124, %v1116
    %v1127 = vmul.f32 %v71, %v1126
    %1129 = vrot.lane.b32.xlu0 %v1077, 1
    %v1130 = vpop.permute.xlu0 %1129
    %v1132 = vsel %vm233, %v1077, %v1130
    %v1133 = vmul.f32 %v70, %v1132
    %1134 = vrot.lane.b32.xlu0 %v1077, 127
    %v1135 = vpop.permute.xlu0 %1134
    %v1137 = vsel %vm239, %v1135, %v1077
    %v1138 = vmul.f32 %v71, %v1137
    %1139 = vrot.lane.b32.xlu0 %v1077, 96
    %v1140 = vpop.permute.xlu0 %1139
    %1142 = vrot.lane.b32.xlu0 %v1077, 97
    %v1143 = vpop.permute.xlu0 %1142
    %v1145 = vsel %vm233, %v1140, %v1143
    %v1146 = vmul.f32 %v70, %v1145
    %1147 = vrot.lane.b32.xlu0 %v1077, 95
    %v1148 = vpop.permute.xlu0 %1147
    %v1150 = vsel %vm239, %v1148, %v1140
    %v1151 = vmul.f32 %v71, %v1150
    %1152 = vrot.lane.b32.xlu0 %v1077, 64
    %v1153 = vpop.permute.xlu0 %1152
    %1155 = vrot.lane.b32.xlu0 %v1077, 65
    %v1156 = vpop.permute.xlu0 %1155
    %v1158 = vsel %vm233, %v1153, %v1156
    %v1159 = vmul.f32 %v70, %v1158
    %1160 = vrot.lane.b32.xlu0 %v1077, 63
    %v1161 = vpop.permute.xlu0 %1160
    %v1163 = vsel %vm239, %v1161, %v1153
    %v1164 = vmul.f32 %v71, %v1163
    %1165 = vrot.lane.b32.xlu0 %v1077, 32
    %v1166 = vpop.permute.xlu0 %1165
    %1168 = vrot.lane.b32.xlu0 %v1077, 33
    %v1169 = vpop.permute.xlu0 %1168
    %v1171 = vsel %vm233, %v1166, %v1169
    %v1172 = vmul.f32 %v70, %v1171
    %1173 = vrot.lane.b32.xlu0 %v1077, 31
    %v1174 = vpop.permute.xlu0 %1173
    %v1176 = vsel %vm239, %v1174, %v1166
    %v1177 = vmul.f32 %v71, %v1176
    %v1179 = vrot.slane %v1083, 4
    %v1182 = vrot.slane %v1088, 4
    %v1184 = vrot.slane %v1076, 4
    %1185 = vrot.lane.b32.xlu0 %v1184, 96
    %v1186 = vpop.permute.xlu0 %1185
    %vm1188 = vcmask 1043456
    %v1189 = vsel %vm1188, 0.0, %v1179
    %v1190 = vsel %vm1188, %v1076, %v1182
    %v1191 = vsel %vm1188, %v1096, %v1186
    %v1193 = vrot.slane %v1109, 4
    %v1196 = vrot.slane %v1114, 4
    %1198 = vrot.lane.b32.xlu0 %v1184, 32
    %v1199 = vpop.permute.xlu0 %1198
    %v1201 = vsel %vm1188, %v1101, %v1193
    %v1202 = vsel %vm1188, %v1103, %v1196
    %v1203 = vsel %vm1188, %v1122, %v1199
    %v1205 = vrot.slane %v1133, 4
    %v1208 = vrot.slane %v1138, 4
    %v1210 = vrot.slane %v1077, 4
    %1211 = vrot.lane.b32.xlu0 %v1210, 96
    %v1212 = vpop.permute.xlu0 %1211
    %v1214 = vsel %vm1188, %v1127, %v1205
    %v1215 = vsel %vm1188, %v1077, %v1208
    %v1216 = vsel %vm1188, %v1146, %v1212
    %v1218 = vrot.slane %v1159, 4
    %v1221 = vrot.slane %v1164, 4
    %1223 = vrot.lane.b32.xlu0 %v1210, 32
    %v1224 = vpop.permute.xlu0 %1223
    %v1226 = vsel %vm1188, %v1151, %v1218
    %v1227 = vsel %vm1188, %v1153, %v1221
    %v1228 = vsel %vm1188, %v1172, %v1224
    %1234 = vrot.lane.b32.xlu0 %v1191, 32
    %v1235 = vpop.permute.xlu0 %1234
    %1236 = vrot.lane.b32.xlu0 %v1201, 32
    %v1237 = vpop.permute.xlu0 %1236
    %1238 = vrot.lane.b32.xlu0 %v1202, 32
    %v1239 = vpop.permute.xlu0 %1238
    %1240 = vrot.lane.b32.xlu0 %v1203, 32
    %v1241 = vpop.permute.xlu0 %1240
    %1242 = vrot.lane.b32.xlu0 %v1127, 32
    %v1243 = vpop.permute.xlu0 %1242
    %1253 = vrot.lane.b32.xlu0 %v1203, 64
    %v1254 = vpop.permute.xlu0 %1253
    %1255 = vrot.lane.b32.xlu0 %v1214, 64
    %v1256 = vpop.permute.xlu0 %1255
    %1257 = vrot.lane.b32.xlu0 %v1215, 64
    %v1258 = vpop.permute.xlu0 %1257
    %1259 = vrot.lane.b32.xlu0 %v1216, 64
    %v1260 = vpop.permute.xlu0 %1259
    %1261 = vrot.lane.b32.xlu0 %v1151, 64
    %v1262 = vpop.permute.xlu0 %1261
    %1272 = vrot.lane.b32.xlu0 %v1216, 96
    %v1273 = vpop.permute.xlu0 %1272
    %1274 = vrot.lane.b32.xlu0 %v1226, 96
    %v1275 = vpop.permute.xlu0 %1274
    %1276 = vrot.lane.b32.xlu0 %v1227, 96
    %v1277 = vpop.permute.xlu0 %1276
    %1278 = vrot.lane.b32.xlu0 %v1228, 96
    %v1279 = vpop.permute.xlu0 %1278
    %1280 = vrot.lane.b32.xlu0 %v1177, 96
    %v1281 = vpop.permute.xlu0 %1280
    %v1287 = vsel %vm927, 0.0, %v1235
    %v1288 = vsel %vm927, %v1189, %v1237
    %v1289 = vsel %vm927, %v1190, %v1239
    %v1290 = vsel %vm927, %v1191, %v1241
    %v1291 = vsel %vm927, %v1101, %v1243
    %v1292 = vsel %vm937, %v1287, %v1254
    %v1293 = vsel %vm937, %v1288, %v1256
    %v1294 = vsel %vm937, %v1289, %v1258
    %v1295 = vsel %vm937, %v1290, %v1260
    %v1296 = vsel %vm937, %v1291, %v1262
    %v1297 = vsel %vm947, %v1292, %v1273
    %v1298 = vsel %vm947, %v1293, %v1275
    %v1299 = vsel %vm947, %v1294, %v1277
    %v1300 = vsel %vm947, %v1295, %v1279
    %v1301 = vsel %vm947, %v1296, %v1281
    %v1302 = vld [vmem:[%s4] sm:$0xf]
    %vm1303 = vcmask 293888
    %v1305 = vsel %vm1303, %v1302, 0
    %v1308 = vsel %vm1188, %v1301, 0
    %1310 = vmatprep.subr.mxu0 0.0
    %1311 = vmatpush1.msra.mxu0 %v1297
    %1312 = vmatprep.subr.mxu0 0.0
    %1313 = vmatpush1.msra.mxu0 %v1298
    %1314 = vmatprep.subr.mxu0 0.0
    %1315 = vmatpush1.msra.mxu0 %v1299
    %1316 = vmatprep.subr.mxu0 0.0
    %1317 = vmatpush1.msra.mxu0 %v1300
    %1318 = vmatprep.subr.mxu0 0.0
    %1319 = vmatpush1.msra.mxu0 %v1308
    %1320 = vmatprep.subr.mxu0 0.0
    %1321 = vmatpush1.msra.mxu0 0.0
    %1322 = vmatprep.subr.mxu0 0.0
    %1323 = vmatpush1.msra.mxu0 0.0
    %1324 = vmatprep.subr.mxu0 0.0
    %1325 = vmatpush1.msra.mxu0 0.0
    %1326 = vmatprep.subr.mxu0 0.0
    %1327 = vmatpush1.msra.mxu0 0.0
    %1328 = vmatprep.subr.mxu0 0.0
    %1329 = vmatpush1.msra.mxu0 0.0
    %1330 = vmatprep.subr.mxu0 0.0
    %1331 = vmatpush1.msra.mxu0 0.0
    %1332 = vmatprep.subr.mxu0 0.0
    %1333 = vmatpush1.msra.mxu0 0.0
    %1334 = vmatprep.subr.mxu0 0.0
    %1335 = vmatpush1.msra.mxu0 0.0
    %1336 = vmatprep.subr.mxu0 0.0
    %1337 = vmatpush1.msra.mxu0 0.0
    %1338 = vmatprep.subr.mxu0 0.0
    %1339 = vmatpush1.msra.mxu0 0.0
    %1340 = vmatprep.subr.mxu0 0.0
    %1341 = vmatpush1.msra.mxu0 0.0
    %1342 = vmatprep.subr.mxu0 0.0
    %1343 = vmatpush1.msra.mxu0 0.0
    %1344 = vmatprep.subr.mxu0 0.0
    %1345 = vmatpush1.msra.mxu0 0.0
    %1346 = vmatprep.subr.mxu0 0.0
    %1347 = vmatpush1.msra.mxu0 0.0
    %1348 = vmatprep.subr.mxu0 0.0
    %1349 = vmatpush1.msra.mxu0 0.0
    %1350 = vmatprep.subr.mxu0 0.0
    %1351 = vmatpush1.msra.mxu0 0.0
    %1352 = vmatprep.subr.mxu0 0.0
    %1353 = vmatpush1.msra.mxu0 0.0
    %1354 = vmatprep.subr.mxu0 0.0
    %1355 = vmatpush1.msra.mxu0 0.0
    %1356 = vmatprep.subr.mxu0 0.0
    %1357 = vmatpush1.msra.mxu0 0.0
    %1358 = vmatprep.subr.mxu0 0.0
    %1359 = vmatpush1.msra.mxu0 0.0
    %1360 = vmatprep.subr.mxu0 0.0
    %1361 = vmatpush1.msra.mxu0 0.0
    %1362 = vmatprep.subr.mxu0 0.0
    %1363 = vmatpush1.msra.mxu0 0.0
    %1364 = vmatprep.subr.mxu0 0.0
    %1365 = vmatpush1.msra.mxu0 0.0
    %1366 = vmatprep.subr.mxu0 0.0
    %1367 = vmatpush1.msra.mxu0 0.0
    %1368 = vmatprep.subr.mxu0 0.0
    %1369 = vmatpush1.msra.mxu0 0.0
    %1370 = vmatprep.subr.mxu0 0.0
    %1371 = vmatpush1.msra.mxu0 0.0
    %1372 = vmatprep.subr.mxu0 0.0
    %1373 = vmatpush1.msra.mxu0 0.0
    %1374 = vmatprep.mubr.f32.mxu0 0.0
    %1375 = vmatmul.mubr.f32.gmra.mrb[0].mxu0 %v1305
    %v1376 = vpop.f32.mrb[0].mxu0
    %v1377 = vadd.f32 0.0, %v1376
    %v1378 = vpop.f32.mrb[0].mxu0
    %1379 = vdwg.mxu0
    %v1380 = vld [vmem:[%s5] sm:$0xf]
    %1382 = vset.pattern.permute.xlu0 0
    %1383 = vperm.xlu0 %1382, %v1380
    %v1384 = vpop.permute.xlu0 %1383
    %v1386 = vmul.f32 %v1377, %v1384
    %v1387 = vld [vmem:[%s6] sm:$0xf]
    %1389 = vset.pattern.permute.xlu0 0
    %1390 = vperm.xlu0 %1389, %v1387
    %v1391 = vpop.permute.xlu0 %1390
    %v1393 = vadd.f32 %v1386, %v1391
    %v1394 = vmax.f32 %v1393, 0.0
    %1396 = vrot.lane.b32.xlu0 %v1394, 1
    %v1397 = vpop.permute.xlu0 %1396
    %v1399 = vsel %vm233, %v1394, %v1397
    %v1400 = vmul.f32 %v70, %v1399
    %1401 = vrot.lane.b32.xlu0 %v1394, 127
    %v1402 = vpop.permute.xlu0 %1401
    %v1404 = vsel %vm239, %v1402, %v1394
    %v1405 = vmul.f32 %v71, %v1404
    %1406 = vrot.lane.b32.xlu0 %v1394, 96
    %v1407 = vpop.permute.xlu0 %1406
    %1409 = vrot.lane.b32.xlu0 %v1394, 97
    %v1410 = vpop.permute.xlu0 %1409
    %v1412 = vsel %vm233, %v1407, %v1410
    %v1413 = vmul.f32 %v70, %v1412
    %1414 = vrot.lane.b32.xlu0 %v1394, 95
    %v1415 = vpop.permute.xlu0 %1414
    %v1417 = vsel %vm239, %v1415, %v1407
    %v1418 = vmul.f32 %v71, %v1417
    %1419 = vrot.lane.b32.xlu0 %v1394, 64
    %v1420 = vpop.permute.xlu0 %1419
    %1422 = vrot.lane.b32.xlu0 %v1394, 65
    %v1423 = vpop.permute.xlu0 %1422
    %v1425 = vsel %vm233, %v1420, %v1423
    %v1426 = vmul.f32 %v70, %v1425
    %1427 = vrot.lane.b32.xlu0 %v1394, 63
    %v1428 = vpop.permute.xlu0 %1427
    %v1430 = vsel %vm239, %v1428, %v1420
    %v1431 = vmul.f32 %v71, %v1430
    %1432 = vrot.lane.b32.xlu0 %v1394, 32
    %v1433 = vpop.permute.xlu0 %1432
    %1435 = vrot.lane.b32.xlu0 %v1394, 33
    %v1436 = vpop.permute.xlu0 %1435
    %v1438 = vsel %vm233, %v1433, %v1436
    %v1439 = vmul.f32 %v70, %v1438
    %1440 = vrot.lane.b32.xlu0 %v1394, 31
    %v1441 = vpop.permute.xlu0 %1440
    %v1443 = vsel %vm239, %v1441, %v1433
    %v1444 = vmul.f32 %v71, %v1443
    %v1446 = vrot.slane %v1400, 4
    %v1449 = vrot.slane %v1405, 4
    %v1451 = vrot.slane %v1394, 4
    %1452 = vrot.lane.b32.xlu0 %v1451, 96
    %v1453 = vpop.permute.xlu0 %1452
    %v1455 = vsel %vm1188, 0.0, %v1446
    %v1456 = vsel %vm1188, %v1394, %v1449
    %v1457 = vsel %vm1188, %v1413, %v1453
    %v1459 = vrot.slane %v1426, 4
    %v1462 = vrot.slane %v1431, 4
    %1464 = vrot.lane.b32.xlu0 %v1451, 32
    %v1465 = vpop.permute.xlu0 %1464
    %v1467 = vsel %vm1188, %v1418, %v1459
    %v1468 = vsel %vm1188, %v1420, %v1462
    %v1469 = vsel %vm1188, %v1439, %v1465
    %1475 = vrot.lane.b32.xlu0 %v1457, 32
    %v1476 = vpop.permute.xlu0 %1475
    %1477 = vrot.lane.b32.xlu0 %v1467, 32
    %v1478 = vpop.permute.xlu0 %1477
    %1479 = vrot.lane.b32.xlu0 %v1468, 32
    %v1480 = vpop.permute.xlu0 %1479
    %1481 = vrot.lane.b32.xlu0 %v1469, 32
    %v1482 = vpop.permute.xlu0 %1481
    %1483 = vrot.lane.b32.xlu0 %v1444, 32
    %v1484 = vpop.permute.xlu0 %1483
    %v1490 = vsel %vm927, 0.0, %v1476
    %v1491 = vsel %vm927, %v1455, %v1478
    %v1492 = vsel %vm927, %v1456, %v1480
    %v1493 = vsel %vm927, %v1457, %v1482
    %v1494 = vsel %vm927, %v1418, %v1484
    %v1495 = vld [vmem:[%s7] sm:$0x3]
    %v1497 = vsel %vm1303, %v1495, 0
    %v1500 = vsel %vm1188, %v1494, 0
    %1502 = vmatprep.subr.mxu0 0.0
    %1503 = vmatpush1.msra.mxu0 %v1490
    %1504 = vmatprep.subr.mxu0 0.0
    %1505 = vmatpush1.msra.mxu0 %v1491
    %1506 = vmatprep.subr.mxu0 0.0
    %1507 = vmatpush1.msra.mxu0 %v1492
    %1508 = vmatprep.subr.mxu0 0.0
    %1509 = vmatpush1.msra.mxu0 %v1493
    %1510 = vmatprep.subr.mxu0 0.0
    %1511 = vmatpush1.msra.mxu0 %v1500
    %1512 = vmatprep.subr.mxu0 0.0
    %1513 = vmatpush1.msra.mxu0 0.0
    %1514 = vmatprep.subr.mxu0 0.0
    %1515 = vmatpush1.msra.mxu0 0.0
    %1516 = vmatprep.subr.mxu0 0.0
    %1517 = vmatpush1.msra.mxu0 0.0
    %1518 = vmatprep.subr.mxu0 0.0
    %1519 = vmatpush1.msra.mxu0 0.0
    %1520 = vmatprep.subr.mxu0 0.0
    %1521 = vmatpush1.msra.mxu0 0.0
    %1522 = vmatprep.subr.mxu0 0.0
    %1523 = vmatpush1.msra.mxu0 0.0
    %1524 = vmatprep.subr.mxu0 0.0
    %1525 = vmatpush1.msra.mxu0 0.0
    %1526 = vmatprep.subr.mxu0 0.0
    %1527 = vmatpush1.msra.mxu0 0.0
    %1528 = vmatprep.subr.mxu0 0.0
    %1529 = vmatpush1.msra.mxu0 0.0
    %1530 = vmatprep.subr.mxu0 0.0
    %1531 = vmatpush1.msra.mxu0 0.0
    %1532 = vmatprep.subr.mxu0 0.0
    %1533 = vmatpush1.msra.mxu0 0.0
    %1534 = vmatprep.subr.mxu0 0.0
    %1535 = vmatpush1.msra.mxu0 0.0
    %1536 = vmatprep.subr.mxu0 0.0
    %1537 = vmatpush1.msra.mxu0 0.0
    %1538 = vmatprep.subr.mxu0 0.0
    %1539 = vmatpush1.msra.mxu0 0.0
    %1540 = vmatprep.subr.mxu0 0.0
    %1541 = vmatpush1.msra.mxu0 0.0
    %1542 = vmatprep.subr.mxu0 0.0
    %1543 = vmatpush1.msra.mxu0 0.0
    %1544 = vmatprep.subr.mxu0 0.0
    %1545 = vmatpush1.msra.mxu0 0.0
    %1546 = vmatprep.subr.mxu0 0.0
    %1547 = vmatpush1.msra.mxu0 0.0
    %1548 = vmatprep.subr.mxu0 0.0
    %1549 = vmatpush1.msra.mxu0 0.0
    %1550 = vmatprep.subr.mxu0 0.0
    %1551 = vmatpush1.msra.mxu0 0.0
    %1552 = vmatprep.subr.mxu0 0.0
    %1553 = vmatpush1.msra.mxu0 0.0
    %1554 = vmatprep.subr.mxu0 0.0
    %1555 = vmatpush1.msra.mxu0 0.0
    %1556 = vmatprep.subr.mxu0 0.0
    %1557 = vmatpush1.msra.mxu0 0.0
    %1558 = vmatprep.subr.mxu0 0.0
    %1559 = vmatpush1.msra.mxu0 0.0
    %1560 = vmatprep.subr.mxu0 0.0
    %1561 = vmatpush1.msra.mxu0 0.0
    %1562 = vmatprep.subr.mxu0 0.0
    %1563 = vmatpush1.msra.mxu0 0.0
    %1564 = vmatprep.subr.mxu0 0.0
    %1565 = vmatpush1.msra.mxu0 0.0
    %1566 = vmatprep.mubr.f32.mxu0 0.0
    %1567 = vmatmul.mubr.f32.gmra.mrb[0].mxu0 %v1497
    %v1568 = vpop.f32.mrb[0].mxu0
    %v1569 = vadd.f32 0.0, %v1568
    %v1570 = vpop.f32.mrb[0].mxu0
    %1571 = vdwg.mxu0
    %v1572 = vld [vmem:[%s8] sm:$0x3]
    %1574 = vset.pattern.permute.xlu0 0
    %1575 = vperm.xlu0 %1574, %v1572
    %v1576 = vpop.permute.xlu0 %1575
    %v1578 = vmul.f32 %v1569, %v1576
    %v1579 = vld [vmem:[%s9] sm:$0x3]
    %1581 = vset.pattern.permute.xlu0 0
    %1582 = vperm.xlu0 %1581, %v1579
    %v1583 = vpop.permute.xlu0 %1582
    %v1585 = vadd.f32 %v1578, %v1583
    %v1586 = vmax.f32 %v1585, 0.0
    %1588 = vrot.lane.b32.xlu0 %v1586, 1
    %v1589 = vpop.permute.xlu0 %1588
    %v1591 = vsel %vm233, %v1586, %v1589
    %v1592 = vmul.f32 %v70, %v1591
    %1593 = vrot.lane.b32.xlu0 %v1586, 127
    %v1594 = vpop.permute.xlu0 %1593
    %v1596 = vsel %vm239, %v1594, %v1586
    %v1597 = vmul.f32 %v71, %v1596
    %1598 = vrot.lane.b32.xlu0 %v1586, 96
    %v1599 = vpop.permute.xlu0 %1598
    %1601 = vrot.lane.b32.xlu0 %v1586, 97
    %v1602 = vpop.permute.xlu0 %1601
    %v1604 = vsel %vm233, %v1599, %v1602
    %v1605 = vmul.f32 %v70, %v1604
    %1606 = vrot.lane.b32.xlu0 %v1586, 95
    %v1607 = vpop.permute.xlu0 %1606
    %v1609 = vsel %vm239, %v1607, %v1599
    %v1610 = vmul.f32 %v71, %v1609
    %v1612 = vrot.slane %v1592, 2
    %v1615 = vrot.slane %v1597, 6
    %v1618 = vrot.slane %v1605, 4
    %v1620 = vrot.slane %v1586, 2
    %1621 = vrot.lane.b32.xlu0 %v1620, 96
    %v1622 = vpop.permute.xlu0 %1621
    %vm1624 = vcmask 1045504
    %v1625 = vsel %vm1624, 0.0, %v1612
    %vm1626 = vcmask 1041408
    %v1627 = vsel %vm1626, %v1586, %v1615
    %v1628 = vsel %vm1188, %v1627, %v1618
    %v1629 = vsel %vm1624, %v1628, %v1622
    %v1630 = vld [vmem:[%s10] sm:$0xff]
    %vm1631 = vcmask 146432
    %v1633 = vsel %vm1631, %v1630, 0
    %v1636 = vsel %vm1626, %v1610, 0
    %1638 = vmatprep.subr.mxu0 0.0
    %1639 = vmatpush1.msra.mxu0 %v1625
    %1640 = vmatprep.subr.mxu0 0.0
    %1641 = vmatpush1.msra.mxu0 %v1629
    %1642 = vmatprep.subr.mxu0 0.0
    %1643 = vmatpush1.msra.mxu0 %v1636
    %1644 = vmatprep.subr.mxu0 0.0
    %1645 = vmatpush1.msra.mxu0 0.0
    %1646 = vmatprep.subr.mxu0 0.0
    %1647 = vmatpush1.msra.mxu0 0.0
    %1648 = vmatprep.subr.mxu0 0.0
    %1649 = vmatpush1.msra.mxu0 0.0
    %1650 = vmatprep.subr.mxu0 0.0
    %1651 = vmatpush1.msra.mxu0 0.0
    %1652 = vmatprep.subr.mxu0 0.0
    %1653 = vmatpush1.msra.mxu0 0.0
    %1654 = vmatprep.subr.mxu0 0.0
    %1655 = vmatpush1.msra.mxu0 0.0
    %1656 = vmatprep.subr.mxu0 0.0
    %1657 = vmatpush1.msra.mxu0 0.0
    %1658 = vmatprep.subr.mxu0 0.0
    %1659 = vmatpush1.msra.mxu0 0.0
    %1660 = vmatprep.subr.mxu0 0.0
    %1661 = vmatpush1.msra.mxu0 0.0
    %1662 = vmatprep.subr.mxu0 0.0
    %1663 = vmatpush1.msra.mxu0 0.0
    %1664 = vmatprep.subr.mxu0 0.0
    %1665 = vmatpush1.msra.mxu0 0.0
    %1666 = vmatprep.subr.mxu0 0.0
    %1667 = vmatpush1.msra.mxu0 0.0
    %1668 = vmatprep.subr.mxu0 0.0
    %1669 = vmatpush1.msra.mxu0 0.0
    %1670 = vmatprep.subr.mxu0 0.0
    %1671 = vmatpush1.msra.mxu0 0.0
    %1672 = vmatprep.subr.mxu0 0.0
    %1673 = vmatpush1.msra.mxu0 0.0
    %1674 = vmatprep.subr.mxu0 0.0
    %1675 = vmatpush1.msra.mxu0 0.0
    %1676 = vmatprep.subr.mxu0 0.0
    %1677 = vmatpush1.msra.mxu0 0.0
    %1678 = vmatprep.subr.mxu0 0.0
    %1679 = vmatpush1.msra.mxu0 0.0
    %1680 = vmatprep.subr.mxu0 0.0
    %1681 = vmatpush1.msra.mxu0 0.0
    %1682 = vmatprep.subr.mxu0 0.0
    %1683 = vmatpush1.msra.mxu0 0.0
    %1684 = vmatprep.subr.mxu0 0.0
    %1685 = vmatpush1.msra.mxu0 0.0
    %1686 = vmatprep.subr.mxu0 0.0
    %1687 = vmatpush1.msra.mxu0 0.0
    %1688 = vmatprep.subr.mxu0 0.0
    %1689 = vmatpush1.msra.mxu0 0.0
    %1690 = vmatprep.subr.mxu0 0.0
    %1691 = vmatpush1.msra.mxu0 0.0
    %1692 = vmatprep.subr.mxu0 0.0
    %1693 = vmatpush1.msra.mxu0 0.0
    %1694 = vmatprep.subr.mxu0 0.0
    %1695 = vmatpush1.msra.mxu0 0.0
    %1696 = vmatprep.subr.mxu0 0.0
    %1697 = vmatpush1.msra.mxu0 0.0
    %1698 = vmatprep.subr.mxu0 0.0
    %1699 = vmatpush1.msra.mxu0 0.0
    %1700 = vmatprep.subr.mxu0 0.0
    %1701 = vmatpush1.msra.mxu0 0.0
    %1702 = vmatprep.mubr.f32.mxu0 0.0
    %1703 = vmatmul.mubr.f32.gmra.mrb[0].mxu0 %v1633
    %v1704 = vpop.f32.mrb[0].mxu0
    %v1705 = vadd.f32 0.0, %v1704
    %v1706 = vpop.f32.mrb[0].mxu0
    %1707 = vdwg.mxu0
    %v1708 = vld [vmem:[%s11] sm:$0xff]
    %1710 = vset.pattern.permute.xlu0 0
    %1711 = vperm.xlu0 %1710, %v1708
    %v1712 = vpop.permute.xlu0 %1711
    %v1714 = vmul.f32 %v1705, %v1712
    %v1715 = vld [vmem:[%s12] sm:$0xff]
    %1717 = vset.pattern.permute.xlu0 0
    %1718 = vperm.xlu0 %1717, %v1715
    %v1719 = vpop.permute.xlu0 %1718
    %v1721 = vadd.f32 %v1714, %v1719
    %v1722 = vmax.f32 %v1721, 0.0
    %v1723 = vld [vmem:[%s13] sm:$0xff]
    %v1724 = vld [vmem:[%s13 + $0x8] sm:$0xff]
    %v1725 = vld [vmem:[%s13 + $0x10] sm:$0xff]
    %v1726 = vld [vmem:[%s13 + $0x18] sm:$0xff]
    %v1728 = vsel %vm927, %v1722, 0
    %1730 = vmatprep.subr.mxu0 0.0
    %1731 = vmatpush1.msra.mxu0 %v1723
    %1732 = vmatprep.subr.mxu0 0.0
    %1733 = vmatpush1.msra.mxu0 %v1724
    %1734 = vmatprep.subr.mxu0 0.0
    %1735 = vmatpush1.msra.mxu0 %v1725
    %1736 = vmatprep.subr.mxu0 0.0
    %1737 = vmatpush1.msra.mxu0 %v1726
    %1738 = vmatprep.subr.mxu0 0.0
    %1739 = vmatpush1.msra.mxu0 0.0
    %1740 = vmatprep.subr.mxu0 0.0
    %1741 = vmatpush1.msra.mxu0 0.0
    %1742 = vmatprep.subr.mxu0 0.0
    %1743 = vmatpush1.msra.mxu0 0.0
    %1744 = vmatprep.subr.mxu0 0.0
    %1745 = vmatpush1.msra.mxu0 0.0
    %1746 = vmatprep.subr.mxu0 0.0
    %1747 = vmatpush1.msra.mxu0 0.0
    %1748 = vmatprep.subr.mxu0 0.0
    %1749 = vmatpush1.msra.mxu0 0.0
    %1750 = vmatprep.subr.mxu0 0.0
    %1751 = vmatpush1.msra.mxu0 0.0
    %1752 = vmatprep.subr.mxu0 0.0
    %1753 = vmatpush1.msra.mxu0 0.0
    %1754 = vmatprep.subr.mxu0 0.0
    %1755 = vmatpush1.msra.mxu0 0.0
    %1756 = vmatprep.subr.mxu0 0.0
    %1757 = vmatpush1.msra.mxu0 0.0
    %1758 = vmatprep.subr.mxu0 0.0
    %1759 = vmatpush1.msra.mxu0 0.0
    %1760 = vmatprep.subr.mxu0 0.0
    %1761 = vmatpush1.msra.mxu0 0.0
    %1762 = vmatprep.subr.mxu0 0.0
    %1763 = vmatpush1.msra.mxu0 0.0
    %1764 = vmatprep.subr.mxu0 0.0
    %1765 = vmatpush1.msra.mxu0 0.0
    %1766 = vmatprep.subr.mxu0 0.0
    %1767 = vmatpush1.msra.mxu0 0.0
    %1768 = vmatprep.subr.mxu0 0.0
    %1769 = vmatpush1.msra.mxu0 0.0
    %1770 = vmatprep.subr.mxu0 0.0
    %1771 = vmatpush1.msra.mxu0 0.0
    %1772 = vmatprep.subr.mxu0 0.0
    %1773 = vmatpush1.msra.mxu0 0.0
    %1774 = vmatprep.subr.mxu0 0.0
    %1775 = vmatpush1.msra.mxu0 0.0
    %1776 = vmatprep.subr.mxu0 0.0
    %1777 = vmatpush1.msra.mxu0 0.0
    %1778 = vmatprep.subr.mxu0 0.0
    %1779 = vmatpush1.msra.mxu0 0.0
    %1780 = vmatprep.subr.mxu0 0.0
    %1781 = vmatpush1.msra.mxu0 0.0
    %1782 = vmatprep.subr.mxu0 0.0
    %1783 = vmatpush1.msra.mxu0 0.0
    %1784 = vmatprep.subr.mxu0 0.0
    %1785 = vmatpush1.msra.mxu0 0.0
    %1786 = vmatprep.subr.mxu0 0.0
    %1787 = vmatpush1.msra.mxu0 0.0
    %1788 = vmatprep.subr.mxu0 0.0
    %1789 = vmatpush1.msra.mxu0 0.0
    %1790 = vmatprep.subr.mxu0 0.0
    %1791 = vmatpush1.msra.mxu0 0.0
    %1792 = vmatprep.subr.mxu0 0.0
    %1793 = vmatpush1.msra.mxu0 0.0
    %1794 = vmatprep.mubr.f32.mxu0 0.0
    %1795 = vmatmul.mubr.f32.gmra.mrb[0].mxu0 %v1728
    %v1796 = vpop.f32.mrb[0].mxu0
    %v1797 = vadd.f32 0.0, %v1796
    %v1798 = vpop.f32.mrb[0].mxu0
    %1799 = vdwg.mxu0
    %1800 = vst [vmem:[#allocation5] sm:$0xff] %v1797
    // Predicated region
    $region62: #{tpu_custom_call.1} parent=1 // pred_check
      _
    $region63: #{tpu_custom_call.1} parent=1 // pred_check_branch
      %1802 = sbr.rel (0) target = $region65
    $region64: #{tpu_custom_call.1} parent=1 // pred_region
      %s1804 = ssub.s32 128, 128
      %1805 = vsyncadd [#allocation4], %s1804
      %s1807 = sshll.u32 [#allocation5], 4
      %s1808 = int_to_ptr.vmem [resolvable:$true] %s1807
      %1810 = dma.vmem_to_hbm [thread:$0]  %s1808, 128, %s14, [#allocation4]
    $region65: #{tpu_custom_call.1} parent=1 // pred_fallthru
      _
    // Predicated region
    $region66: #{tpu_custom_call.1} parent=1 // pred_check
      _
    $region67: #{tpu_custom_call.1} parent=1 // pred_check_branch
      %1812 = sbr.rel (0) target = $region69
    $region68: #{tpu_custom_call.1} parent=1 // pred_region
      %1813 = dma.done [#allocation4], 128
    $region69: #{tpu_custom_call.1} parent=1 // pred_fallthru
      _
    %1814 = vsyncpa [#allocation3], 1
    %1815 = vsyncpa [#allocation4], 1

</llo_original>
